<compile_context>
chip_gen: v7x
topology: tpu7x:2x2x1
jax: 0.10.0
libtpu: 0.0.40
codegen_flags: <defaults>
</compile_context>

<pallas_src>
import jax
import jax.numpy as jnp
from jax.experimental import pallas as pl
from jax.experimental.pallas import tpu as pltpu

EPS = 1e-5
LAYER_DIMS = (128, 64, 32, 8)


def _make_kernel(T, num_subtiles, sub_bb, compute_dtype, widths):
    """Build the fused MultiModel kernel.

    widths[i] = number of columns in the i-th fused weight
                (= layer_dim + (T if it carries a head segment else 0) + 1 mean column).
    """
    w1_width, w2_width, w3_width, w4_width = widths

    def kernel(x_ref, w1_ref, w2_ref, w3_ref, w4_ref, wh4_ref,
               bias_ref, gamma_ref, beta_ref, o_ref):

        def layer(x_in, w_ref, row, n, width, has_head):
            # Fused dot: [layer cols | head cols | mean col]; f32 accumulation on the MXU.
            hf = jnp.dot(x_in, w_ref[...], preferred_element_type=jnp.float32)
            hf = hf + bias_ref[row:row + 1, :width]
            h = hf[:, :n]                       # LayerNorm input, starts at lane 0
            mu = hf[:, width - 1:width]         # LN mean folded into the MXU column
            var = jnp.mean(jnp.square(h - mu), axis=-1, keepdims=True)
            hn = (h - mu) * jax.lax.rsqrt(var + EPS)
            y = jnp.maximum(hn * gamma_ref[row:row + 1, :n]
                            + beta_ref[row:row + 1, :n], 0.0)    # affine + ReLU in f32
            head = hf[:, n:n + T] if has_head else None
            return y.astype(compute_dtype), head

        def chain(xs):
            xs = xs.astype(compute_dtype)       # in-kernel cast of the (sub_bb, F) tile
            x128, _ = layer(xs, w1_ref, 0, 128, w1_width, False)
            x64, acc = layer(x128, w2_ref, 1, 64, w2_width, True)   # acc = x128 @ wh1 + bh
            x32, h3 = layer(x64, w3_ref, 2, 32, w3_width, True)     # x64 @ wh2
            acc = acc + h3
            x8, h4 = layer(x32, w4_ref, 3, 8, w4_width, True)       # x32 @ wh3
            acc = acc + h4
            acc = acc + jnp.dot(x8, wh4_ref[...], preferred_element_type=jnp.float32)
            return acc.astype(o_ref.dtype)

        # Independent batch sub-tiles: the scheduler can overlap MXU work of one
        # sub-tile with the LayerNorm (VPU/EUP/XLU) work of the other.
        for s in range(num_subtiles):
            lo = s * sub_bb
            o_ref[lo:lo + sub_bb, :] = chain(x_ref[lo:lo + sub_bb, :])

    return kernel


def _prep_operands(params, T, compute_dtype):
    """Fuse head weights + LN-mean columns into the layer weights; pack small vectors into slabs."""
    w1, w2, w3, w4 = params["w1"], params["w2"], params["w3"], params["w4"]
    b1, b2, b3, b4 = params["b1"], params["b2"], params["b3"], params["b4"]
    wh, bh = params["wh"], params["bh"]
    wh1, wh2, wh3, wh4 = wh[0:128, :], wh[128:192, :], wh[192:224, :], wh[224:232, :]

    def mcol(w):   # (K, 1) column: row-wise mean over the layer's output columns
        return jnp.mean(w, axis=1, keepdims=True)

    def mrow(b):   # (1, 1) mean of the layer bias
        return jnp.mean(b, axis=1, keepdims=True)

    w1f = jnp.concatenate([w1, mcol(w1)], axis=1)               # (F,   128 + 1)
    w2f = jnp.concatenate([w2, wh1, mcol(w2)], axis=1)          # (128, 64 + T + 1)
    w3f = jnp.concatenate([w3, wh2, mcol(w3)], axis=1)          # (64,  32 + T + 1)
    w4f = jnp.concatenate([w4, wh3, mcol(w4)], axis=1)          # (32,   8 + T + 1)
    widths = (w1f.shape[1], w2f.shape[1], w3f.shape[1], w4f.shape[1])
    slab_w = max(widths)

    zT = jnp.zeros((1, T), jnp.float32)
    rows = [
        jnp.concatenate([b1, mrow(b1)], axis=1),          # layer 1 (no head segment)
        jnp.concatenate([b2, bh, mrow(b2)], axis=1),      # head bias folded in here once
        jnp.concatenate([b3, zT, mrow(b3)], axis=1),
        jnp.concatenate([b4, zT, mrow(b4)], axis=1),
    ]
    bias_slab = jnp.concatenate(
        [jnp.pad(r, ((0, 0), (0, slab_w - r.shape[1]))) for r in rows], axis=0
    ).astype(jnp.float32)                                  # (4, slab_w)

    def pad128(v):
        return jnp.pad(v, ((0, 0), (0, 128 - v.shape[1])))
    gamma_slab = jnp.concatenate(
        [pad128(params[f"g{i}"]) for i in (1, 2, 3, 4)], axis=0).astype(jnp.float32)
    beta_slab = jnp.concatenate(
        [pad128(params[f"be{i}"]) for i in (1, 2, 3, 4)], axis=0).astype(jnp.float32)

    cd = compute_dtype
    return (w1f.astype(cd), w2f.astype(cd), w3f.astype(cd), w4f.astype(cd),
            wh4.astype(cd), bias_slab, gamma_slab, beta_slab, widths)


def multi_model_forward(x, params, *, block_b=1024, num_subtiles=2,
                        compute_dtype=jnp.bfloat16, vmem_limit_bytes=None):
    """MultiModel forward pass with a batch-tiled, head-fused Pallas kernel.

    block_b: batch tile (main tuning knob; 1024-2048 recommended on real batches).
             v7x: cap around 2048 (64 MiB VMEM, 32 MiB scoped default) or pass
             vmem_limit_bytes with headroom; keep the grid even/>=2 so
             dimension_semantics=("parallel",) feeds both TensorCores.
             v6e: for block_b 4096-8192 raise vmem_limit_bytes above 32 MiB.
    num_subtiles: in-body independent batch sub-tiles (2 recommended; falls back to 1
             when block_b is too small / not a multiple of 8*num_subtiles).
    compute_dtype: MXU operand dtype (bf16 recommended; LN statistics stay f32).
    """
    B, F = x.shape
    T = params["bh"].shape[-1]

    if block_b >= B:
        block_b = B
    else:
        block_b = max(8, (block_b // 8) * 8)   # keep sublane (8) alignment for tiles

    if num_subtiles < 1:
        num_subtiles = 1
    if block_b < 8 * num_subtiles or block_b % (8 * num_subtiles) != 0:
        num_subtiles = 1
    sub_bb = block_b // num_subtiles

    (w1f, w2f, w3f, w4f, wh4, bias_slab, gamma_slab, beta_slab, widths) = \
        _prep_operands(params, T, compute_dtype)
    param_args = [w1f, w2f, w3f, w4f, wh4, bias_slab, gamma_slab, beta_slab]

    def whole(arr):
        nd = arr.ndim
        return pl.BlockSpec(tuple(arr.shape), lambda i, _nd=nd: (0,) * _nd)

    in_specs = [pl.BlockSpec((block_b, F), lambda i: (i, 0))]
    in_specs += [whole(a) for a in param_args]

    kernel = _make_kernel(T, num_subtiles, sub_bb, compute_dtype, widths)

    cp_kwargs = dict(dimension_semantics=("parallel",))
    if vmem_limit_bytes is not None:
        cp_kwargs["vmem_limit_bytes"] = vmem_limit_bytes

    # NOTE: T (=target_num) < 128 lanes -> masked partial stores on the output path;
    # output bytes are tiny, so this is second-order.
    out = pl.pallas_call(
        kernel,
        out_shape=jax.ShapeDtypeStruct((B, T), jnp.float32),
        grid_spec=pltpu.PrefetchScalarGridSpec(
            num_scalar_prefetch=0,
            grid=(pl.cdiv(B, block_b),),          # ragged last tile handled by masking
            in_specs=in_specs,
            out_specs=pl.BlockSpec((block_b, T), lambda i: (i, 0)),
        ),
        compiler_params=pltpu.CompilerParams(**cp_kwargs),
    )(x, *param_args)
    return out


def init_params(key, feature_num, target_num):
    """Deterministic synthetic init. Linear weights stored as (in, out)."""
    ks = jax.random.split(key, 10)
    dims = [(feature_num, 128), (128, 64), (64, 32), (32, 8)]
    params = {}
    for idx, (din, dout) in enumerate(dims, start=1):
        scale = 1.0 / jnp.sqrt(jnp.float32(din))
        params[f"w{idx}"] = (
            jax.random.uniform(ks[2 * idx - 2], (din, dout), jnp.float32, -1.0, 1.0) * scale)
        params[f"b{idx}"] = (
            jax.random.uniform(ks[2 * idx - 1], (1, dout), jnp.float32, -1.0, 1.0) * scale)
        # LayerNorm affine params (torch default: gamma=1, beta=0)
        params[f"g{idx}"] = jnp.ones((1, dout), jnp.float32)
        params[f"be{idx}"] = jnp.zeros((1, dout), jnp.float32)

    cat_dim = sum(LAYER_DIMS)  # 232
    scale = 1.0 / jnp.sqrt(jnp.float32(cat_dim))
    params["wh"] = (
        jax.random.uniform(ks[8], (cat_dim, target_num), jnp.float32, -1.0, 1.0) * scale)
    params["bh"] = (
        jax.random.uniform(ks[9], (1, target_num), jnp.float32, -1.0, 1.0) * scale)
    return params


def reference_forward(x, params):
    """Pure-JAX f32 reference mirroring the PyTorch module."""
    def block(x, w, b, g, beta):
        h = x @ w + b
        mu = jnp.mean(h, axis=-1, keepdims=True)
        var = jnp.mean((h - mu) ** 2, axis=-1, keepdims=True)
        hn = (h - mu) / jnp.sqrt(var + EPS)
        return jax.nn.relu(hn * g + beta)

    x128 = block(x, params["w1"], params["b1"], params["g1"], params["be1"])
    x64 = block(x128, params["w2"], params["b2"], params["g2"], params["be2"])
    x32 = block(x64, params["w3"], params["b3"], params["g3"], params["be3"])
    x8 = block(x32, params["w4"], params["b4"], params["g4"], params["be4"])
    cat = jnp.concatenate([x128, x64, x32, x8], axis=1)
    return cat @ params["wh"] + params["bh"]


if __name__ == "__main__":
    feature_num = 16
    target_num = 4
    batch = 16  # small demo batch

    key = jax.random.PRNGKey(0)
    kx, kp = jax.random.split(key)
    x = jax.random.normal(kx, (batch, feature_num), jnp.float32)
    params = init_params(kp, feature_num, target_num)

    ref = reference_forward(x, params)

    # Exact-precision path (f32 MXU operands), single tile with 2-way sub-tile interleave.
    out_f32 = jax.block_until_ready(
        multi_model_forward(x, params, block_b=16, compute_dtype=jnp.float32))
    assert out_f32.shape == (batch, target_num)
    assert jnp.allclose(out_f32, ref, atol=1e-4, rtol=1e-4)

    # Multi-step grid path (2 grid steps -> even grid; exercises the batch pipeline).
    out_grid = jax.block_until_ready(
        multi_model_forward(x, params, block_b=8, compute_dtype=jnp.float32))
    assert jnp.allclose(out_grid, ref, atol=1e-4, rtol=1e-4)

    # Fast path (bf16 MXU operands, f32 LayerNorm statistics): loose tolerance vs f32 reference.
    out_bf16 = jax.block_until_ready(
        multi_model_forward(x, params, block_b=16, compute_dtype=jnp.bfloat16))
    assert out_bf16.shape == (batch, target_num)
    assert jnp.allclose(out_bf16, ref, atol=5e-2, rtol=5e-2)

    print("KERNEL_OK")
</pallas_src>

<mosaic_0001>
module attributes {stable_mosaic.version = 11 : i64} {
  func.func @kernel(%arg0: i32, %arg1: memref<16x16xf32, #tpu.memory_space<vmem>>, %arg2: memref<16x129xf32, #tpu.memory_space<vmem>>, %arg3: memref<128x69xf32, #tpu.memory_space<vmem>>, %arg4: memref<64x37xf32, #tpu.memory_space<vmem>>, %arg5: memref<32x13xf32, #tpu.memory_space<vmem>>, %arg6: memref<8x4xf32, #tpu.memory_space<vmem>>, %arg7: memref<4x129xf32, #tpu.memory_space<vmem>>, %arg8: memref<4x128xf32, #tpu.memory_space<vmem>>, %arg9: memref<4x128xf32, #tpu.memory_space<vmem>>, %arg10: memref<16x4xf32, #tpu.memory_space<vmem>>) attributes {dimension_semantics = [#tpu.dimension_semantics<parallel>], iteration_bounds = array<i64: 1>, scalar_prefetch = 0 : i64, scratch_operands = 0 : i64, tpu.core_type = #tpu.core_type<tc>, window_params = [{transform_indices = @transform_0, window_bounds = array<i64: 16, 16>}, {pipeline_mode = #tpu.pipeline_mode<synchronous>, transform_indices = @transform_1, window_bounds = array<i64: 16, 129>}, {pipeline_mode = #tpu.pipeline_mode<synchronous>, transform_indices = @transform_2, window_bounds = array<i64: 128, 69>}, {pipeline_mode = #tpu.pipeline_mode<synchronous>, transform_indices = @transform_3, window_bounds = array<i64: 64, 37>}, {pipeline_mode = #tpu.pipeline_mode<synchronous>, transform_indices = @transform_4, window_bounds = array<i64: 32, 13>}, {pipeline_mode = #tpu.pipeline_mode<synchronous>, transform_indices = @transform_5, window_bounds = array<i64: 8, 4>}, {pipeline_mode = #tpu.pipeline_mode<synchronous>, transform_indices = @transform_6, window_bounds = array<i64: 4, 129>}, {pipeline_mode = #tpu.pipeline_mode<synchronous>, transform_indices = @transform_7, window_bounds = array<i64: 4, 128>}, {pipeline_mode = #tpu.pipeline_mode<synchronous>, transform_indices = @transform_8, window_bounds = array<i64: 4, 128>}, {transform_indices = @transform_9, window_bounds = array<i64: 16, 4>}]} {
    %c0 = arith.constant 0 : index
    %c0_0 = arith.constant 0 : index
    %0 = vector.load %arg1[%c0, %c0_0] : memref<16x16xf32, #tpu.memory_space<vmem>>, vector<8x16xf32>
    %c0_1 = arith.constant 0 : index
    %c0_2 = arith.constant 0 : index
    %1 = vector.load %arg2[%c0_1, %c0_2] : memref<16x129xf32, #tpu.memory_space<vmem>>, vector<16x129xf32>
    %cst = arith.constant dense<0.000000e+00> : vector<8x129xf32>
    %2 = tpu.matmul %0, %1, %cst {dimension_numbers = #tpu.dot_dimension_numbers<[1], [0], [0], [1], [0, 0, 1, 1], [], []>} : vector<8x16xf32>, vector<16x129xf32>, vector<8x129xf32> -> vector<8x129xf32>
    %c0_3 = arith.constant 0 : index
    %c0_4 = arith.constant 0 : index
    %3 = vector.load %arg7[%c0_3, %c0_4] : memref<4x129xf32, #tpu.memory_space<vmem>>, vector<1x129xf32>
    %4 = vector.broadcast %3 : vector<1x129xf32> to vector<8x129xf32>
    %5 = arith.addf %2, %4 : vector<8x129xf32>
    %6 = vector.extract_strided_slice %5 {offsets = [0, 0], sizes = [8, 128], strides = [1, 1]} : vector<8x129xf32> to vector<8x128xf32>
    %7 = vector.extract_strided_slice %5 {offsets = [0, 128], sizes = [8, 1], strides = [1, 1]} : vector<8x129xf32> to vector<8x1xf32>
    %8 = vector.broadcast %7 : vector<8x1xf32> to vector<8x128xf32>
    %9 = arith.subf %6, %8 : vector<8x128xf32>
    %10 = arith.mulf %9, %9 : vector<8x128xf32>
    %cst_5 = arith.constant dense<0.000000e+00> : vector<8xf32>
    %11 = vector.multi_reduction <add>, %10, %cst_5 [1] : vector<8x128xf32> to vector<8xf32>
    %12 = vector.shape_cast %11 : vector<8xf32> to vector<8x1xf32>
    %cst_6 = arith.constant 1.280000e+02 : f32
    %13 = vector.broadcast %cst_6 : f32 to vector<8x1xf32>
    %14 = arith.divf %12, %13 : vector<8x1xf32>
    %15 = vector.broadcast %7 : vector<8x1xf32> to vector<8x128xf32>
    %16 = arith.subf %6, %15 : vector<8x128xf32>
    %cst_7 = arith.constant 9.99999974E-6 : f32
    %17 = vector.broadcast %cst_7 : f32 to vector<8x1xf32>
    %18 = arith.addf %14, %17 : vector<8x1xf32>
    %19 = math.rsqrt %18 : vector<8x1xf32>
    %20 = vector.broadcast %19 : vector<8x1xf32> to vector<8x128xf32>
    %21 = arith.mulf %16, %20 : vector<8x128xf32>
    %c0_8 = arith.constant 0 : index
    %c0_9 = arith.constant 0 : index
    %22 = vector.load %arg8[%c0_8, %c0_9] : memref<4x128xf32, #tpu.memory_space<vmem>>, vector<1x128xf32>
    %23 = vector.broadcast %22 : vector<1x128xf32> to vector<8x128xf32>
    %24 = arith.mulf %21, %23 : vector<8x128xf32>
    %c0_10 = arith.constant 0 : index
    %c0_11 = arith.constant 0 : index
    %25 = vector.load %arg9[%c0_10, %c0_11] : memref<4x128xf32, #tpu.memory_space<vmem>>, vector<1x128xf32>
    %26 = vector.broadcast %25 : vector<1x128xf32> to vector<8x128xf32>
    %27 = arith.addf %24, %26 : vector<8x128xf32>
    %cst_12 = arith.constant 0.000000e+00 : f32
    %28 = vector.broadcast %cst_12 : f32 to vector<8x128xf32>
    %29 = arith.maximumf %27, %28 : vector<8x128xf32>
    %c0_13 = arith.constant 0 : index
    %c0_14 = arith.constant 0 : index
    %30 = vector.load %arg3[%c0_13, %c0_14] : memref<128x69xf32, #tpu.memory_space<vmem>>, vector<128x69xf32>
    %cst_15 = arith.constant dense<0.000000e+00> : vector<8x69xf32>
    %31 = tpu.matmul %29, %30, %cst_15 {dimension_numbers = #tpu.dot_dimension_numbers<[1], [0], [0], [1], [0, 0, 1, 1], [], []>} : vector<8x128xf32>, vector<128x69xf32>, vector<8x69xf32> -> vector<8x69xf32>
    %c1 = arith.constant 1 : index
    %c0_16 = arith.constant 0 : index
    %32 = vector.load %arg7[%c1, %c0_16] : memref<4x129xf32, #tpu.memory_space<vmem>>, vector<1x69xf32>
    %33 = vector.broadcast %32 : vector<1x69xf32> to vector<8x69xf32>
    %34 = arith.addf %31, %33 : vector<8x69xf32>
    %35 = vector.extract_strided_slice %34 {offsets = [0, 0], sizes = [8, 64], strides = [1, 1]} : vector<8x69xf32> to vector<8x64xf32>
    %36 = vector.extract_strided_slice %34 {offsets = [0, 68], sizes = [8, 1], strides = [1, 1]} : vector<8x69xf32> to vector<8x1xf32>
    %37 = vector.broadcast %36 : vector<8x1xf32> to vector<8x64xf32>
    %38 = arith.subf %35, %37 : vector<8x64xf32>
    %39 = arith.mulf %38, %38 : vector<8x64xf32>
    %cst_17 = arith.constant dense<0.000000e+00> : vector<8xf32>
    %40 = vector.multi_reduction <add>, %39, %cst_17 [1] : vector<8x64xf32> to vector<8xf32>
    %41 = vector.shape_cast %40 : vector<8xf32> to vector<8x1xf32>
    %cst_18 = arith.constant 6.400000e+01 : f32
    %42 = vector.broadcast %cst_18 : f32 to vector<8x1xf32>
    %43 = arith.divf %41, %42 : vector<8x1xf32>
    %44 = vector.broadcast %36 : vector<8x1xf32> to vector<8x64xf32>
    %45 = arith.subf %35, %44 : vector<8x64xf32>
    %cst_19 = arith.constant 9.99999974E-6 : f32
    %46 = vector.broadcast %cst_19 : f32 to vector<8x1xf32>
    %47 = arith.addf %43, %46 : vector<8x1xf32>
    %48 = math.rsqrt %47 : vector<8x1xf32>
    %49 = vector.broadcast %48 : vector<8x1xf32> to vector<8x64xf32>
    %50 = arith.mulf %45, %49 : vector<8x64xf32>
    %c1_20 = arith.constant 1 : index
    %c0_21 = arith.constant 0 : index
    %51 = vector.load %arg8[%c1_20, %c0_21] : memref<4x128xf32, #tpu.memory_space<vmem>>, vector<1x64xf32>
    %52 = vector.broadcast %51 : vector<1x64xf32> to vector<8x64xf32>
    %53 = arith.mulf %50, %52 : vector<8x64xf32>
    %c1_22 = arith.constant 1 : index
    %c0_23 = arith.constant 0 : index
    %54 = vector.load %arg9[%c1_22, %c0_23] : memref<4x128xf32, #tpu.memory_space<vmem>>, vector<1x64xf32>
    %55 = vector.broadcast %54 : vector<1x64xf32> to vector<8x64xf32>
    %56 = arith.addf %53, %55 : vector<8x64xf32>
    %cst_24 = arith.constant 0.000000e+00 : f32
    %57 = vector.broadcast %cst_24 : f32 to vector<8x64xf32>
    %58 = arith.maximumf %56, %57 : vector<8x64xf32>
    %59 = vector.extract_strided_slice %34 {offsets = [0, 64], sizes = [8, 4], strides = [1, 1]} : vector<8x69xf32> to vector<8x4xf32>
    %c0_25 = arith.constant 0 : index
    %c0_26 = arith.constant 0 : index
    %60 = vector.load %arg4[%c0_25, %c0_26] : memref<64x37xf32, #tpu.memory_space<vmem>>, vector<64x37xf32>
    %cst_27 = arith.constant dense<0.000000e+00> : vector<8x37xf32>
    %61 = tpu.matmul %58, %60, %cst_27 {dimension_numbers = #tpu.dot_dimension_numbers<[1], [0], [0], [1], [0, 0, 1, 1], [], []>} : vector<8x64xf32>, vector<64x37xf32>, vector<8x37xf32> -> vector<8x37xf32>
    %c2 = arith.constant 2 : index
    %c0_28 = arith.constant 0 : index
    %62 = vector.load %arg7[%c2, %c0_28] : memref<4x129xf32, #tpu.memory_space<vmem>>, vector<1x37xf32>
    %63 = vector.broadcast %62 : vector<1x37xf32> to vector<8x37xf32>
    %64 = arith.addf %61, %63 : vector<8x37xf32>
    %65 = vector.extract_strided_slice %64 {offsets = [0, 0], sizes = [8, 32], strides = [1, 1]} : vector<8x37xf32> to vector<8x32xf32>
    %66 = vector.extract_strided_slice %64 {offsets = [0, 36], sizes = [8, 1], strides = [1, 1]} : vector<8x37xf32> to vector<8x1xf32>
    %67 = vector.broadcast %66 : vector<8x1xf32> to vector<8x32xf32>
    %68 = arith.subf %65, %67 : vector<8x32xf32>
    %69 = arith.mulf %68, %68 : vector<8x32xf32>
    %cst_29 = arith.constant dense<0.000000e+00> : vector<8xf32>
    %70 = vector.multi_reduction <add>, %69, %cst_29 [1] : vector<8x32xf32> to vector<8xf32>
    %71 = vector.shape_cast %70 : vector<8xf32> to vector<8x1xf32>
    %cst_30 = arith.constant 3.200000e+01 : f32
    %72 = vector.broadcast %cst_30 : f32 to vector<8x1xf32>
    %73 = arith.divf %71, %72 : vector<8x1xf32>
    %74 = vector.broadcast %66 : vector<8x1xf32> to vector<8x32xf32>
    %75 = arith.subf %65, %74 : vector<8x32xf32>
    %cst_31 = arith.constant 9.99999974E-6 : f32
    %76 = vector.broadcast %cst_31 : f32 to vector<8x1xf32>
    %77 = arith.addf %73, %76 : vector<8x1xf32>
    %78 = math.rsqrt %77 : vector<8x1xf32>
    %79 = vector.broadcast %78 : vector<8x1xf32> to vector<8x32xf32>
    %80 = arith.mulf %75, %79 : vector<8x32xf32>
    %c2_32 = arith.constant 2 : index
    %c0_33 = arith.constant 0 : index
    %81 = vector.load %arg8[%c2_32, %c0_33] : memref<4x128xf32, #tpu.memory_space<vmem>>, vector<1x32xf32>
    %82 = vector.broadcast %81 : vector<1x32xf32> to vector<8x32xf32>
    %83 = arith.mulf %80, %82 : vector<8x32xf32>
    %c2_34 = arith.constant 2 : index
    %c0_35 = arith.constant 0 : index
    %84 = vector.load %arg9[%c2_34, %c0_35] : memref<4x128xf32, #tpu.memory_space<vmem>>, vector<1x32xf32>
    %85 = vector.broadcast %84 : vector<1x32xf32> to vector<8x32xf32>
    %86 = arith.addf %83, %85 : vector<8x32xf32>
    %cst_36 = arith.constant 0.000000e+00 : f32
    %87 = vector.broadcast %cst_36 : f32 to vector<8x32xf32>
    %88 = arith.maximumf %86, %87 : vector<8x32xf32>
    %89 = vector.extract_strided_slice %64 {offsets = [0, 32], sizes = [8, 4], strides = [1, 1]} : vector<8x37xf32> to vector<8x4xf32>
    %90 = arith.addf %59, %89 : vector<8x4xf32>
    %c0_37 = arith.constant 0 : index
    %c0_38 = arith.constant 0 : index
    %91 = vector.load %arg5[%c0_37, %c0_38] : memref<32x13xf32, #tpu.memory_space<vmem>>, vector<32x13xf32>
    %cst_39 = arith.constant dense<0.000000e+00> : vector<8x13xf32>
    %92 = tpu.matmul %88, %91, %cst_39 {dimension_numbers = #tpu.dot_dimension_numbers<[1], [0], [0], [1], [0, 0, 1, 1], [], []>} : vector<8x32xf32>, vector<32x13xf32>, vector<8x13xf32> -> vector<8x13xf32>
    %c3 = arith.constant 3 : index
    %c0_40 = arith.constant 0 : index
    %93 = vector.load %arg7[%c3, %c0_40] : memref<4x129xf32, #tpu.memory_space<vmem>>, vector<1x13xf32>
    %94 = vector.broadcast %93 : vector<1x13xf32> to vector<8x13xf32>
    %95 = arith.addf %92, %94 : vector<8x13xf32>
    %96 = vector.extract_strided_slice %95 {offsets = [0, 0], sizes = [8, 8], strides = [1, 1]} : vector<8x13xf32> to vector<8x8xf32>
    %97 = vector.extract_strided_slice %95 {offsets = [0, 12], sizes = [8, 1], strides = [1, 1]} : vector<8x13xf32> to vector<8x1xf32>
    %98 = vector.broadcast %97 : vector<8x1xf32> to vector<8x8xf32>
    %99 = arith.subf %96, %98 : vector<8x8xf32>
    %100 = arith.mulf %99, %99 : vector<8x8xf32>
    %cst_41 = arith.constant dense<0.000000e+00> : vector<8xf32>
    %101 = vector.multi_reduction <add>, %100, %cst_41 [1] : vector<8x8xf32> to vector<8xf32>
    %102 = vector.shape_cast %101 : vector<8xf32> to vector<8x1xf32>
    %cst_42 = arith.constant 8.000000e+00 : f32
    %103 = vector.broadcast %cst_42 : f32 to vector<8x1xf32>
    %104 = arith.divf %102, %103 : vector<8x1xf32>
    %105 = vector.broadcast %97 : vector<8x1xf32> to vector<8x8xf32>
    %106 = arith.subf %96, %105 : vector<8x8xf32>
    %cst_43 = arith.constant 9.99999974E-6 : f32
    %107 = vector.broadcast %cst_43 : f32 to vector<8x1xf32>
    %108 = arith.addf %104, %107 : vector<8x1xf32>
    %109 = math.rsqrt %108 : vector<8x1xf32>
    %110 = vector.broadcast %109 : vector<8x1xf32> to vector<8x8xf32>
    %111 = arith.mulf %106, %110 : vector<8x8xf32>
    %c3_44 = arith.constant 3 : index
    %c0_45 = arith.constant 0 : index
    %112 = vector.load %arg8[%c3_44, %c0_45] : memref<4x128xf32, #tpu.memory_space<vmem>>, vector<1x8xf32>
    %113 = vector.broadcast %112 : vector<1x8xf32> to vector<8x8xf32>
    %114 = arith.mulf %111, %113 : vector<8x8xf32>
    %c3_46 = arith.constant 3 : index
    %c0_47 = arith.constant 0 : index
    %115 = vector.load %arg9[%c3_46, %c0_47] : memref<4x128xf32, #tpu.memory_space<vmem>>, vector<1x8xf32>
    %116 = vector.broadcast %115 : vector<1x8xf32> to vector<8x8xf32>
    %117 = arith.addf %114, %116 : vector<8x8xf32>
    %cst_48 = arith.constant 0.000000e+00 : f32
    %118 = vector.broadcast %cst_48 : f32 to vector<8x8xf32>
    %119 = arith.maximumf %117, %118 : vector<8x8xf32>
    %120 = vector.extract_strided_slice %95 {offsets = [0, 8], sizes = [8, 4], strides = [1, 1]} : vector<8x13xf32> to vector<8x4xf32>
    %121 = arith.addf %90, %120 : vector<8x4xf32>
    %c0_49 = arith.constant 0 : index
    %c0_50 = arith.constant 0 : index
    %122 = vector.load %arg6[%c0_49, %c0_50] : memref<8x4xf32, #tpu.memory_space<vmem>>, vector<8x4xf32>
    %cst_51 = arith.constant dense<0.000000e+00> : vector<8x4xf32>
    %123 = tpu.matmul %119, %122, %cst_51 {dimension_numbers = #tpu.dot_dimension_numbers<[1], [0], [0], [1], [0, 0, 1, 1], [], []>} : vector<8x8xf32>, vector<8x4xf32>, vector<8x4xf32> -> vector<8x4xf32>
    %124 = arith.addf %121, %123 : vector<8x4xf32>
    %c0_52 = arith.constant 0 : index
    %c0_53 = arith.constant 0 : index
    %125 = vector.load %arg10[%c0_52, %c0_53] : memref<16x4xf32, #tpu.memory_space<vmem>>, vector<8x4xf32>
    tpu.vector_store %arg10[%c0_52, %c0_53], %124 {strides = array<i32>} : memref<16x4xf32, #tpu.memory_space<vmem>>, vector<8x4xf32>,
    %c8 = arith.constant 8 : index
    %c0_54 = arith.constant 0 : index
    %126 = vector.load %arg1[%c8, %c0_54] : memref<16x16xf32, #tpu.memory_space<vmem>>, vector<8x16xf32>
    %c0_55 = arith.constant 0 : index
    %c0_56 = arith.constant 0 : index
    %127 = vector.load %arg2[%c0_55, %c0_56] : memref<16x129xf32, #tpu.memory_space<vmem>>, vector<16x129xf32>
    %cst_57 = arith.constant dense<0.000000e+00> : vector<8x129xf32>
    %128 = tpu.matmul %126, %127, %cst_57 {dimension_numbers = #tpu.dot_dimension_numbers<[1], [0], [0], [1], [0, 0, 1, 1], [], []>} : vector<8x16xf32>, vector<16x129xf32>, vector<8x129xf32> -> vector<8x129xf32>
    %c0_58 = arith.constant 0 : index
    %c0_59 = arith.constant 0 : index
    %129 = vector.load %arg7[%c0_58, %c0_59] : memref<4x129xf32, #tpu.memory_space<vmem>>, vector<1x129xf32>
    %130 = vector.broadcast %129 : vector<1x129xf32> to vector<8x129xf32>
    %131 = arith.addf %128, %130 : vector<8x129xf32>
    %132 = vector.extract_strided_slice %131 {offsets = [0, 0], sizes = [8, 128], strides = [1, 1]} : vector<8x129xf32> to vector<8x128xf32>
    %133 = vector.extract_strided_slice %131 {offsets = [0, 128], sizes = [8, 1], strides = [1, 1]} : vector<8x129xf32> to vector<8x1xf32>
    %134 = vector.broadcast %133 : vector<8x1xf32> to vector<8x128xf32>
    %135 = arith.subf %132, %134 : vector<8x128xf32>
    %136 = arith.mulf %135, %135 : vector<8x128xf32>
    %cst_60 = arith.constant dense<0.000000e+00> : vector<8xf32>
    %137 = vector.multi_reduction <add>, %136, %cst_60 [1] : vector<8x128xf32> to vector<8xf32>
    %138 = vector.shape_cast %137 : vector<8xf32> to vector<8x1xf32>
    %cst_61 = arith.constant 1.280000e+02 : f32
    %139 = vector.broadcast %cst_61 : f32 to vector<8x1xf32>
    %140 = arith.divf %138, %139 : vector<8x1xf32>
    %141 = vector.broadcast %133 : vector<8x1xf32> to vector<8x128xf32>
    %142 = arith.subf %132, %141 : vector<8x128xf32>
    %cst_62 = arith.constant 9.99999974E-6 : f32
    %143 = vector.broadcast %cst_62 : f32 to vector<8x1xf32>
    %144 = arith.addf %140, %143 : vector<8x1xf32>
    %145 = math.rsqrt %144 : vector<8x1xf32>
    %146 = vector.broadcast %145 : vector<8x1xf32> to vector<8x128xf32>
    %147 = arith.mulf %142, %146 : vector<8x128xf32>
    %c0_63 = arith.constant 0 : index
    %c0_64 = arith.constant 0 : index
    %148 = vector.load %arg8[%c0_63, %c0_64] : memref<4x128xf32, #tpu.memory_space<vmem>>, vector<1x128xf32>
    %149 = vector.broadcast %148 : vector<1x128xf32> to vector<8x128xf32>
    %150 = arith.mulf %147, %149 : vector<8x128xf32>
    %c0_65 = arith.constant 0 : index
    %c0_66 = arith.constant 0 : index
    %151 = vector.load %arg9[%c0_65, %c0_66] : memref<4x128xf32, #tpu.memory_space<vmem>>, vector<1x128xf32>
    %152 = vector.broadcast %151 : vector<1x128xf32> to vector<8x128xf32>
    %153 = arith.addf %150, %152 : vector<8x128xf32>
    %cst_67 = arith.constant 0.000000e+00 : f32
    %154 = vector.broadcast %cst_67 : f32 to vector<8x128xf32>
    %155 = arith.maximumf %153, %154 : vector<8x128xf32>
    %c0_68 = arith.constant 0 : index
    %c0_69 = arith.constant 0 : index
    %156 = vector.load %arg3[%c0_68, %c0_69] : memref<128x69xf32, #tpu.memory_space<vmem>>, vector<128x69xf32>
    %cst_70 = arith.constant dense<0.000000e+00> : vector<8x69xf32>
    %157 = tpu.matmul %155, %156, %cst_70 {dimension_numbers = #tpu.dot_dimension_numbers<[1], [0], [0], [1], [0, 0, 1, 1], [], []>} : vector<8x128xf32>, vector<128x69xf32>, vector<8x69xf32> -> vector<8x69xf32>
    %c1_71 = arith.constant 1 : index
    %c0_72 = arith.constant 0 : index
    %158 = vector.load %arg7[%c1_71, %c0_72] : memref<4x129xf32, #tpu.memory_space<vmem>>, vector<1x69xf32>
    %159 = vector.broadcast %158 : vector<1x69xf32> to vector<8x69xf32>
    %160 = arith.addf %157, %159 : vector<8x69xf32>
    %161 = vector.extract_strided_slice %160 {offsets = [0, 0], sizes = [8, 64], strides = [1, 1]} : vector<8x69xf32> to vector<8x64xf32>
    %162 = vector.extract_strided_slice %160 {offsets = [0, 68], sizes = [8, 1], strides = [1, 1]} : vector<8x69xf32> to vector<8x1xf32>
    %163 = vector.broadcast %162 : vector<8x1xf32> to vector<8x64xf32>
    %164 = arith.subf %161, %163 : vector<8x64xf32>
    %165 = arith.mulf %164, %164 : vector<8x64xf32>
    %cst_73 = arith.constant dense<0.000000e+00> : vector<8xf32>
    %166 = vector.multi_reduction <add>, %165, %cst_73 [1] : vector<8x64xf32> to vector<8xf32>
    %167 = vector.shape_cast %166 : vector<8xf32> to vector<8x1xf32>
    %cst_74 = arith.constant 6.400000e+01 : f32
    %168 = vector.broadcast %cst_74 : f32 to vector<8x1xf32>
    %169 = arith.divf %167, %168 : vector<8x1xf32>
    %170 = vector.broadcast %162 : vector<8x1xf32> to vector<8x64xf32>
    %171 = arith.subf %161, %170 : vector<8x64xf32>
    %cst_75 = arith.constant 9.99999974E-6 : f32
    %172 = vector.broadcast %cst_75 : f32 to vector<8x1xf32>
    %173 = arith.addf %169, %172 : vector<8x1xf32>
    %174 = math.rsqrt %173 : vector<8x1xf32>
    %175 = vector.broadcast %174 : vector<8x1xf32> to vector<8x64xf32>
    %176 = arith.mulf %171, %175 : vector<8x64xf32>
    %c1_76 = arith.constant 1 : index
    %c0_77 = arith.constant 0 : index
    %177 = vector.load %arg8[%c1_76, %c0_77] : memref<4x128xf32, #tpu.memory_space<vmem>>, vector<1x64xf32>
    %178 = vector.broadcast %177 : vector<1x64xf32> to vector<8x64xf32>
    %179 = arith.mulf %176, %178 : vector<8x64xf32>
    %c1_78 = arith.constant 1 : index
    %c0_79 = arith.constant 0 : index
    %180 = vector.load %arg9[%c1_78, %c0_79] : memref<4x128xf32, #tpu.memory_space<vmem>>, vector<1x64xf32>
    %181 = vector.broadcast %180 : vector<1x64xf32> to vector<8x64xf32>
    %182 = arith.addf %179, %181 : vector<8x64xf32>
    %cst_80 = arith.constant 0.000000e+00 : f32
    %183 = vector.broadcast %cst_80 : f32 to vector<8x64xf32>
    %184 = arith.maximumf %182, %183 : vector<8x64xf32>
    %185 = vector.extract_strided_slice %160 {offsets = [0, 64], sizes = [8, 4], strides = [1, 1]} : vector<8x69xf32> to vector<8x4xf32>
    %c0_81 = arith.constant 0 : index
    %c0_82 = arith.constant 0 : index
    %186 = vector.load %arg4[%c0_81, %c0_82] : memref<64x37xf32, #tpu.memory_space<vmem>>, vector<64x37xf32>
    %cst_83 = arith.constant dense<0.000000e+00> : vector<8x37xf32>
    %187 = tpu.matmul %184, %186, %cst_83 {dimension_numbers = #tpu.dot_dimension_numbers<[1], [0], [0], [1], [0, 0, 1, 1], [], []>} : vector<8x64xf32>, vector<64x37xf32>, vector<8x37xf32> -> vector<8x37xf32>
    %c2_84 = arith.constant 2 : index
    %c0_85 = arith.constant 0 : index
    %188 = vector.load %arg7[%c2_84, %c0_85] : memref<4x129xf32, #tpu.memory_space<vmem>>, vector<1x37xf32>
    %189 = vector.broadcast %188 : vector<1x37xf32> to vector<8x37xf32>
    %190 = arith.addf %187, %189 : vector<8x37xf32>
    %191 = vector.extract_strided_slice %190 {offsets = [0, 0], sizes = [8, 32], strides = [1, 1]} : vector<8x37xf32> to vector<8x32xf32>
    %192 = vector.extract_strided_slice %190 {offsets = [0, 36], sizes = [8, 1], strides = [1, 1]} : vector<8x37xf32> to vector<8x1xf32>
    %193 = vector.broadcast %192 : vector<8x1xf32> to vector<8x32xf32>
    %194 = arith.subf %191, %193 : vector<8x32xf32>
    %195 = arith.mulf %194, %194 : vector<8x32xf32>
    %cst_86 = arith.constant dense<0.000000e+00> : vector<8xf32>
    %196 = vector.multi_reduction <add>, %195, %cst_86 [1] : vector<8x32xf32> to vector<8xf32>
    %197 = vector.shape_cast %196 : vector<8xf32> to vector<8x1xf32>
    %cst_87 = arith.constant 3.200000e+01 : f32
    %198 = vector.broadcast %cst_87 : f32 to vector<8x1xf32>
    %199 = arith.divf %197, %198 : vector<8x1xf32>
    %200 = vector.broadcast %192 : vector<8x1xf32> to vector<8x32xf32>
    %201 = arith.subf %191, %200 : vector<8x32xf32>
    %cst_88 = arith.constant 9.99999974E-6 : f32
    %202 = vector.broadcast %cst_88 : f32 to vector<8x1xf32>
    %203 = arith.addf %199, %202 : vector<8x1xf32>
    %204 = math.rsqrt %203 : vector<8x1xf32>
    %205 = vector.broadcast %204 : vector<8x1xf32> to vector<8x32xf32>
    %206 = arith.mulf %201, %205 : vector<8x32xf32>
    %c2_89 = arith.constant 2 : index
    %c0_90 = arith.constant 0 : index
    %207 = vector.load %arg8[%c2_89, %c0_90] : memref<4x128xf32, #tpu.memory_space<vmem>>, vector<1x32xf32>
    %208 = vector.broadcast %207 : vector<1x32xf32> to vector<8x32xf32>
    %209 = arith.mulf %206, %208 : vector<8x32xf32>
    %c2_91 = arith.constant 2 : index
    %c0_92 = arith.constant 0 : index
    %210 = vector.load %arg9[%c2_91, %c0_92] : memref<4x128xf32, #tpu.memory_space<vmem>>, vector<1x32xf32>
    %211 = vector.broadcast %210 : vector<1x32xf32> to vector<8x32xf32>
    %212 = arith.addf %209, %211 : vector<8x32xf32>
    %cst_93 = arith.constant 0.000000e+00 : f32
    %213 = vector.broadcast %cst_93 : f32 to vector<8x32xf32>
    %214 = arith.maximumf %212, %213 : vector<8x32xf32>
    %215 = vector.extract_strided_slice %190 {offsets = [0, 32], sizes = [8, 4], strides = [1, 1]} : vector<8x37xf32> to vector<8x4xf32>
    %216 = arith.addf %185, %215 : vector<8x4xf32>
    %c0_94 = arith.constant 0 : index
    %c0_95 = arith.constant 0 : index
    %217 = vector.load %arg5[%c0_94, %c0_95] : memref<32x13xf32, #tpu.memory_space<vmem>>, vector<32x13xf32>
    %cst_96 = arith.constant dense<0.000000e+00> : vector<8x13xf32>
    %218 = tpu.matmul %214, %217, %cst_96 {dimension_numbers = #tpu.dot_dimension_numbers<[1], [0], [0], [1], [0, 0, 1, 1], [], []>} : vector<8x32xf32>, vector<32x13xf32>, vector<8x13xf32> -> vector<8x13xf32>
    %c3_97 = arith.constant 3 : index
    %c0_98 = arith.constant 0 : index
    %219 = vector.load %arg7[%c3_97, %c0_98] : memref<4x129xf32, #tpu.memory_space<vmem>>, vector<1x13xf32>
    %220 = vector.broadcast %219 : vector<1x13xf32> to vector<8x13xf32>
    %221 = arith.addf %218, %220 : vector<8x13xf32>
    %222 = vector.extract_strided_slice %221 {offsets = [0, 0], sizes = [8, 8], strides = [1, 1]} : vector<8x13xf32> to vector<8x8xf32>
    %223 = vector.extract_strided_slice %221 {offsets = [0, 12], sizes = [8, 1], strides = [1, 1]} : vector<8x13xf32> to vector<8x1xf32>
    %224 = vector.broadcast %223 : vector<8x1xf32> to vector<8x8xf32>
    %225 = arith.subf %222, %224 : vector<8x8xf32>
    %226 = arith.mulf %225, %225 : vector<8x8xf32>
    %cst_99 = arith.constant dense<0.000000e+00> : vector<8xf32>
    %227 = vector.multi_reduction <add>, %226, %cst_99 [1] : vector<8x8xf32> to vector<8xf32>
    %228 = vector.shape_cast %227 : vector<8xf32> to vector<8x1xf32>
    %cst_100 = arith.constant 8.000000e+00 : f32
    %229 = vector.broadcast %cst_100 : f32 to vector<8x1xf32>
    %230 = arith.divf %228, %229 : vector<8x1xf32>
    %231 = vector.broadcast %223 : vector<8x1xf32> to vector<8x8xf32>
    %232 = arith.subf %222, %231 : vector<8x8xf32>
    %cst_101 = arith.constant 9.99999974E-6 : f32
    %233 = vector.broadcast %cst_101 : f32 to vector<8x1xf32>
    %234 = arith.addf %230, %233 : vector<8x1xf32>
    %235 = math.rsqrt %234 : vector<8x1xf32>
    %236 = vector.broadcast %235 : vector<8x1xf32> to vector<8x8xf32>
    %237 = arith.mulf %232, %236 : vector<8x8xf32>
    %c3_102 = arith.constant 3 : index
    %c0_103 = arith.constant 0 : index
    %238 = vector.load %arg8[%c3_102, %c0_103] : memref<4x128xf32, #tpu.memory_space<vmem>>, vector<1x8xf32>
    %239 = vector.broadcast %238 : vector<1x8xf32> to vector<8x8xf32>
    %240 = arith.mulf %237, %239 : vector<8x8xf32>
    %c3_104 = arith.constant 3 : index
    %c0_105 = arith.constant 0 : index
    %241 = vector.load %arg9[%c3_104, %c0_105] : memref<4x128xf32, #tpu.memory_space<vmem>>, vector<1x8xf32>
    %242 = vector.broadcast %241 : vector<1x8xf32> to vector<8x8xf32>
    %243 = arith.addf %240, %242 : vector<8x8xf32>
    %cst_106 = arith.constant 0.000000e+00 : f32
    %244 = vector.broadcast %cst_106 : f32 to vector<8x8xf32>
    %245 = arith.maximumf %243, %244 : vector<8x8xf32>
    %246 = vector.extract_strided_slice %221 {offsets = [0, 8], sizes = [8, 4], strides = [1, 1]} : vector<8x13xf32> to vector<8x4xf32>
    %247 = arith.addf %216, %246 : vector<8x4xf32>
    %c0_107 = arith.constant 0 : index
    %c0_108 = arith.constant 0 : index
    %248 = vector.load %arg6[%c0_107, %c0_108] : memref<8x4xf32, #tpu.memory_space<vmem>>, vector<8x4xf32>
    %cst_109 = arith.constant dense<0.000000e+00> : vector<8x4xf32>
    %249 = tpu.matmul %245, %248, %cst_109 {dimension_numbers = #tpu.dot_dimension_numbers<[1], [0], [0], [1], [0, 0, 1, 1], [], []>} : vector<8x8xf32>, vector<8x4xf32>, vector<8x4xf32> -> vector<8x4xf32>
    %250 = arith.addf %247, %249 : vector<8x4xf32>
    %c8_110 = arith.constant 8 : index
    %c0_111 = arith.constant 0 : index
    %251 = vector.load %arg10[%c8_110, %c0_111] : memref<16x4xf32, #tpu.memory_space<vmem>>, vector<8x4xf32>
    tpu.vector_store %arg10[%c8_110, %c0_111], %250 {strides = array<i32>} : memref<16x4xf32, #tpu.memory_space<vmem>>, vector<8x4xf32>,
    return
  }
  func.func @transform_0(%arg0: i32) -> (i32, i32) {
    %c0_i32 = arith.constant 0 : i32
    %c0_i32_0 = arith.constant 0 : i32
    return %arg0, %c0_i32 : i32, i32
  }
  func.func @transform_1(%arg0: i32) -> (i32, i32) {
    %c0_i32 = arith.constant 0 : i32
    %c0_i32_0 = arith.constant 0 : i32
    %c0_i32_1 = arith.constant 0 : i32
    return %c0_i32, %c0_i32_0 : i32, i32
  }
  func.func @transform_2(%arg0: i32) -> (i32, i32) {
    %c0_i32 = arith.constant 0 : i32
    %c0_i32_0 = arith.constant 0 : i32
    %c0_i32_1 = arith.constant 0 : i32
    return %c0_i32, %c0_i32_0 : i32, i32
  }
  func.func @transform_3(%arg0: i32) -> (i32, i32) {
    %c0_i32 = arith.constant 0 : i32
    %c0_i32_0 = arith.constant 0 : i32
    %c0_i32_1 = arith.constant 0 : i32
    return %c0_i32, %c0_i32_0 : i32, i32
  }
  func.func @transform_4(%arg0: i32) -> (i32, i32) {
    %c0_i32 = arith.constant 0 : i32
    %c0_i32_0 = arith.constant 0 : i32
    %c0_i32_1 = arith.constant 0 : i32
    return %c0_i32, %c0_i32_0 : i32, i32
  }
  func.func @transform_5(%arg0: i32) -> (i32, i32) {
    %c0_i32 = arith.constant 0 : i32
    %c0_i32_0 = arith.constant 0 : i32
    %c0_i32_1 = arith.constant 0 : i32
    return %c0_i32, %c0_i32_0 : i32, i32
  }
  func.func @transform_6(%arg0: i32) -> (i32, i32) {
    %c0_i32 = arith.constant 0 : i32
    %c0_i32_0 = arith.constant 0 : i32
    %c0_i32_1 = arith.constant 0 : i32
    return %c0_i32, %c0_i32_0 : i32, i32
  }
  func.func @transform_7(%arg0: i32) -> (i32, i32) {
    %c0_i32 = arith.constant 0 : i32
    %c0_i32_0 = arith.constant 0 : i32
    %c0_i32_1 = arith.constant 0 : i32
    return %c0_i32, %c0_i32_0 : i32, i32
  }
  func.func @transform_8(%arg0: i32) -> (i32, i32) {
    %c0_i32 = arith.constant 0 : i32
    %c0_i32_0 = arith.constant 0 : i32
    %c0_i32_1 = arith.constant 0 : i32
    return %c0_i32, %c0_i32_0 : i32, i32
  }
  func.func @transform_9(%arg0: i32) -> (i32, i32) {
    %c0_i32 = arith.constant 0 : i32
    %c0_i32_0 = arith.constant 0 : i32
    return %arg0, %c0_i32 : i32, i32
  }
}

</mosaic_0001>

<llo_original>
// kernel: tpu_custom_call.1
$region0: #{tpu_custom_call.1}
  #allocation0 [shape = 'u32[]', space=smem, size = 0x4, offset = 0x4, fixed_abs, tag = 'smem constant byte address 0x4 - core index']
  #allocation1 [shape = 'u32[144,128]{1,0:T(1,128)}', space=vmem, size = 0x12000, scoped, tag = 'internal scratch']
  %s0 = inlined_call_operand.vmem [shape: f32[16,16], index: 0, kind: input, shape index: {}]
  %s1 = inlined_call_operand.vmem [shape: f32[16,129], index: 1, kind: input, shape index: {}]
  %s2 = inlined_call_operand.vmem [shape: f32[128,69], index: 2, kind: input, shape index: {}]
  %s3 = inlined_call_operand.vmem [shape: f32[64,37], index: 3, kind: input, shape index: {}]
  %s4 = inlined_call_operand.vmem [shape: f32[32,13], index: 4, kind: input, shape index: {}]
  %s5 = inlined_call_operand.vmem [shape: f32[8,4], index: 5, kind: input, shape index: {}]
  %s6 = inlined_call_operand.vmem [shape: f32[4,129], index: 6, kind: input, shape index: {}]
  %s7 = inlined_call_operand.vmem [shape: f32[4,128], index: 7, kind: input, shape index: {}]
  %s8 = inlined_call_operand.vmem [shape: f32[4,128], index: 8, kind: input, shape index: {}]
  %s9 = inlined_call_operand.vmem [shape: f32[16,4], index: 9, kind: output, shape index: {}]
  %s10 = sld [smem:[#allocation0]]
  $region46: #{tpu_custom_call.1} parent=0
    _
  %s12 = ssub.s32 1, %s10
  %s13 = scalar_select 0, %s12, %s10
  // Predicated region
  $region2: #{tpu_custom_call.1} parent=0 // pred_check
    _
  $region3: #{tpu_custom_call.1} parent=0 // pred_check_branch
    %15 = sbr.rel (0) target = $region5
  $region4: #{tpu_custom_call.1} parent=0 // pred_region
    _
  $region5: #{tpu_custom_call.1} parent=0 // pred_fallthru
    _
  // Predicated region
  $region6: #{tpu_custom_call.1} parent=0 // pred_check
    _
  $region7: #{tpu_custom_call.1} parent=0 // pred_check_branch
    %17 = sbr.rel (0) target = $region9
  $region8: #{tpu_custom_call.1} parent=0 // pred_region
    _
  $region9: #{tpu_custom_call.1} parent=0 // pred_fallthru
    _
  // Predicated region
  $region10: #{tpu_custom_call.1} parent=0 // pred_check
    _
  $region11: #{tpu_custom_call.1} parent=0 // pred_check_branch
    %19 = sbr.rel (0) target = $region13
  $region12: #{tpu_custom_call.1} parent=0 // pred_region
    _
  $region13: #{tpu_custom_call.1} parent=0 // pred_fallthru
    _
  // Predicated region
  $region14: #{tpu_custom_call.1} parent=0 // pred_check
    _
  $region15: #{tpu_custom_call.1} parent=0 // pred_check_branch
    %21 = sbr.rel (0) target = $region17
  $region16: #{tpu_custom_call.1} parent=0 // pred_region
    _
  $region17: #{tpu_custom_call.1} parent=0 // pred_fallthru
    _
  // Predicated region
  $region18: #{tpu_custom_call.1} parent=0 // pred_check
    _
  $region19: #{tpu_custom_call.1} parent=0 // pred_check_branch
    %23 = sbr.rel (0) target = $region21
  $region20: #{tpu_custom_call.1} parent=0 // pred_region
    _
  $region21: #{tpu_custom_call.1} parent=0 // pred_fallthru
    _
  // Predicated region
  $region22: #{tpu_custom_call.1} parent=0 // pred_check
    _
  $region23: #{tpu_custom_call.1} parent=0 // pred_check_branch
    %25 = sbr.rel (0) target = $region25
  $region24: #{tpu_custom_call.1} parent=0 // pred_region
    _
  $region25: #{tpu_custom_call.1} parent=0 // pred_fallthru
    _
  // Predicated region
  $region26: #{tpu_custom_call.1} parent=0 // pred_check
    _
  $region27: #{tpu_custom_call.1} parent=0 // pred_check_branch
    %27 = sbr.rel (0) target = $region29
  $region28: #{tpu_custom_call.1} parent=0 // pred_region
    _
  $region29: #{tpu_custom_call.1} parent=0 // pred_fallthru
    _
  // Predicated region
  $region30: #{tpu_custom_call.1} parent=0 // pred_check
    _
  $region31: #{tpu_custom_call.1} parent=0 // pred_check_branch
    %29 = sbr.rel (0) target = $region33
  $region32: #{tpu_custom_call.1} parent=0 // pred_region
    _
  $region33: #{tpu_custom_call.1} parent=0 // pred_fallthru
    _
  // Predicated region
  $region34: #{tpu_custom_call.1} parent=0 // pred_check
    _
  $region35: #{tpu_custom_call.1} parent=0 // pred_check_branch
    %31 = sbr.rel (0) target = $region37
  $region36: #{tpu_custom_call.1} parent=0 // pred_region
    _
  $region37: #{tpu_custom_call.1} parent=0 // pred_fallthru
    _
  %v32 = vld [vmem:[%s0] sm:$0xff]
  %v33 = vld [vmem:[%s1] sm:$0xff]
  %v34 = vld [vmem:[%s1 + $0x8] sm:$0xff]
  %v35 = vld [vmem:[%s1 + $0x10] sm:$0xff]
  %v36 = vld [vmem:[%s1 + $0x18] sm:$0xff]
  %v37 = vld [vmem:[%s6] ss:$4 sm:$0x3]
  %v39 = vlaneseq
  %v40 = vshrl.u32 %v39, 7
  %v41 = vsub.s32 0, %v40
  %v42 = vrot.slane %v37, %v41
  %v43 = vlaneseq
  %v44 = vshrl.u32 %v43, 7
  %v45 = vsub.s32 1, %v44
  %v46 = vrot.slane %v37, %v45
  %vm49 = vcmask 130048
  %v51 = vsel %vm49, %v32, 0
  %53 = vmatprep.subr.mxu0 %v34
  %54 = vmatpush1.msra.mxu0 %v33
  %55 = vmatprep.subr.mxu0 %v36
  %56 = vmatpush1.msra.mxu0 %v35
  %57 = vmatprep.subr.mxu0 0.0
  %58 = vmatpush1.msra.mxu0 0.0
  %59 = vmatprep.subr.mxu0 0.0
  %60 = vmatpush1.msra.mxu0 0.0
  %61 = vmatprep.subr.mxu0 0.0
  %62 = vmatpush1.msra.mxu0 0.0
  %63 = vmatprep.subr.mxu0 0.0
  %64 = vmatpush1.msra.mxu0 0.0
  %65 = vmatprep.subr.mxu0 0.0
  %66 = vmatpush1.msra.mxu0 0.0
  %67 = vmatprep.subr.mxu0 0.0
  %68 = vmatpush1.msra.mxu0 0.0
  %69 = vmatprep.subr.mxu0 0.0
  %70 = vmatpush1.msra.mxu0 0.0
  %71 = vmatprep.subr.mxu0 0.0
  %72 = vmatpush1.msra.mxu0 0.0
  %73 = vmatprep.subr.mxu0 0.0
  %74 = vmatpush1.msra.mxu0 0.0
  %75 = vmatprep.subr.mxu0 0.0
  %76 = vmatpush1.msra.mxu0 0.0
  %77 = vmatprep.subr.mxu0 0.0
  %78 = vmatpush1.msra.mxu0 0.0
  %79 = vmatprep.subr.mxu0 0.0
  %80 = vmatpush1.msra.mxu0 0.0
  %81 = vmatprep.subr.mxu0 0.0
  %82 = vmatpush1.msra.mxu0 0.0
  %83 = vmatprep.subr.mxu0 0.0
  %84 = vmatpush1.msra.mxu0 0.0
  %85 = vmatprep.subr.mxu0 0.0
  %86 = vmatpush1.msra.mxu0 0.0
  %87 = vmatprep.subr.mxu0 0.0
  %88 = vmatpush1.msra.mxu0 0.0
  %89 = vmatprep.subr.mxu0 0.0
  %90 = vmatpush1.msra.mxu0 0.0
  %91 = vmatprep.subr.mxu0 0.0
  %92 = vmatpush1.msra.mxu0 0.0
  %93 = vmatprep.subr.mxu0 0.0
  %94 = vmatpush1.msra.mxu0 0.0
  %95 = vmatprep.subr.mxu0 0.0
  %96 = vmatpush1.msra.mxu0 0.0
  %97 = vmatprep.subr.mxu0 0.0
  %98 = vmatpush1.msra.mxu0 0.0
  %99 = vmatprep.subr.mxu0 0.0
  %100 = vmatpush1.msra.mxu0 0.0
  %101 = vmatprep.subr.mxu0 0.0
  %102 = vmatpush1.msra.mxu0 0.0
  %103 = vmatprep.subr.mxu0 0.0
  %104 = vmatpush1.msra.mxu0 0.0
  %105 = vmatprep.subr.mxu0 0.0
  %106 = vmatpush1.msra.mxu0 0.0
  %107 = vmatprep.subr.mxu0 0.0
  %108 = vmatpush1.msra.mxu0 0.0
  %109 = vmatprep.subr.mxu0 0.0
  %110 = vmatpush1.msra.mxu0 0.0
  %111 = vmatprep.subr.mxu0 0.0
  %112 = vmatpush1.msra.mxu0 0.0
  %113 = vmatprep.subr.mxu0 0.0
  %114 = vmatpush1.msra.mxu0 0.0
  %115 = vmatprep.subr.mxu0 0.0
  %116 = vmatpush1.msra.mxu0 0.0
  %117 = vmatprep.mubr.f32.mxu0 0.0
  %118 = vmatmul.mubr.f32.gmra.mrb[0].mxu0 %v51
  %v119 = vpop.f32.mrb[0].mxu0
  %v120 = vadd.f32 %v42, %v119
  %v121 = vpop.f32.mrb[0].mxu0
  %v122 = vadd.f32 %v46, %v121
  %123 = vdwg.mxu0
  %125 = vset.pattern.permute.xlu0 0
  %126 = vperm.xlu0 %125, %v122
  %v127 = vpop.permute.xlu0 %126
  %v129 = vsub.f32 %v120, %v127
  %v130 = vmul.f32 %v129, %v129
  %131 = vadd.xlane.f32.xlu0 %v130
  %v132 = vpop.xlane.xlu0 %131
  %v133 = vrcp.pop 128.0
  %v134 = vmul.f32 %v132, %v133
  %v135 = vadd.f32 %v134, 1e-05
  %v136 = vrsqrt.pop %v135
  %v137 = vmul.f32 %v129, %v136
  %v138 = vld [vmem:[%s7] sm:$0x1]
  %v139 = vlaneseq
  %v140 = vshrl.u32 %v139, 7
  %v141 = vsub.s32 0, %v140
  %v142 = vrot.slane %v138, %v141
  %v143 = vmul.f32 %v137, %v142
  %v144 = vld [vmem:[%s8] sm:$0x1]
  %v145 = vlaneseq
  %v146 = vshrl.u32 %v145, 7
  %v147 = vsub.s32 0, %v146
  %v148 = vrot.slane %v144, %v147
  %v149 = vadd.f32 %v143, %v148
  %v150 = vmax.f32 %v149, 0.0
  %v151 = vld [vmem:[%s2] sm:$0xff]
  %v152 = vld [vmem:[%s2 + $0x8] sm:$0xff]
  %v153 = vld [vmem:[%s2 + $0x10] sm:$0xff]
  %v154 = vld [vmem:[%s2 + $0x18] sm:$0xff]
  %v155 = vld [vmem:[%s2 + $0x20] sm:$0xff]
  %v156 = vld [vmem:[%s2 + $0x28] sm:$0xff]
  %v157 = vld [vmem:[%s2 + $0x30] sm:$0xff]
  %v158 = vld [vmem:[%s2 + $0x38] sm:$0xff]
  %v159 = vld [vmem:[%s2 + $0x40] sm:$0xff]
  %v160 = vld [vmem:[%s2 + $0x48] sm:$0xff]
  %v161 = vld [vmem:[%s2 + $0x50] sm:$0xff]
  %v162 = vld [vmem:[%s2 + $0x58] sm:$0xff]
  %v163 = vld [vmem:[%s2 + $0x60] sm:$0xff]
  %v164 = vld [vmem:[%s2 + $0x68] sm:$0xff]
  %v165 = vld [vmem:[%s2 + $0x70] sm:$0xff]
  %v166 = vld [vmem:[%s2 + $0x78] sm:$0xff]
  %v167 = vld [vmem:[%s6 + $0x1] sm:$0x1]
  %v168 = vlaneseq
  %v169 = vshrl.u32 %v168, 7
  %v170 = vsub.s32 0, %v169
  %v171 = vrot.slane %v167, %v170
  %172 = vmatprep.subr.mxu0 0.0
  %173 = vmatpush1.msra.mxu0 %v151
  %174 = vmatprep.subr.mxu0 0.0
  %175 = vmatpush1.msra.mxu0 %v152
  %176 = vmatprep.subr.mxu0 0.0
  %177 = vmatpush1.msra.mxu0 %v153
  %178 = vmatprep.subr.mxu0 0.0
  %179 = vmatpush1.msra.mxu0 %v154
  %180 = vmatprep.subr.mxu0 0.0
  %181 = vmatpush1.msra.mxu0 %v155
  %182 = vmatprep.subr.mxu0 0.0
  %183 = vmatpush1.msra.mxu0 %v156
  %184 = vmatprep.subr.mxu0 0.0
  %185 = vmatpush1.msra.mxu0 %v157
  %186 = vmatprep.subr.mxu0 0.0
  %187 = vmatpush1.msra.mxu0 %v158
  %188 = vmatprep.subr.mxu0 0.0
  %189 = vmatpush1.msra.mxu0 %v159
  %190 = vmatprep.subr.mxu0 0.0
  %191 = vmatpush1.msra.mxu0 %v160
  %192 = vmatprep.subr.mxu0 0.0
  %193 = vmatpush1.msra.mxu0 %v161
  %194 = vmatprep.subr.mxu0 0.0
  %195 = vmatpush1.msra.mxu0 %v162
  %196 = vmatprep.subr.mxu0 0.0
  %197 = vmatpush1.msra.mxu0 %v163
  %198 = vmatprep.subr.mxu0 0.0
  %199 = vmatpush1.msra.mxu0 %v164
  %200 = vmatprep.subr.mxu0 0.0
  %201 = vmatpush1.msra.mxu0 %v165
  %202 = vmatprep.subr.mxu0 0.0
  %203 = vmatpush1.msra.mxu0 %v166
  %204 = vmatprep.subr.mxu0 0.0
  %205 = vmatpush1.msra.mxu0 0.0
  %206 = vmatprep.subr.mxu0 0.0
  %207 = vmatpush1.msra.mxu0 0.0
  %208 = vmatprep.subr.mxu0 0.0
  %209 = vmatpush1.msra.mxu0 0.0
  %210 = vmatprep.subr.mxu0 0.0
  %211 = vmatpush1.msra.mxu0 0.0
  %212 = vmatprep.subr.mxu0 0.0
  %213 = vmatpush1.msra.mxu0 0.0
  %214 = vmatprep.subr.mxu0 0.0
  %215 = vmatpush1.msra.mxu0 0.0
  %216 = vmatprep.subr.mxu0 0.0
  %217 = vmatpush1.msra.mxu0 0.0
  %218 = vmatprep.subr.mxu0 0.0
  %219 = vmatpush1.msra.mxu0 0.0
  %220 = vmatprep.subr.mxu0 0.0
  %221 = vmatpush1.msra.mxu0 0.0
  %222 = vmatprep.subr.mxu0 0.0
  %223 = vmatpush1.msra.mxu0 0.0
  %224 = vmatprep.subr.mxu0 0.0
  %225 = vmatpush1.msra.mxu0 0.0
  %226 = vmatprep.subr.mxu0 0.0
  %227 = vmatpush1.msra.mxu0 0.0
  %228 = vmatprep.subr.mxu0 0.0
  %229 = vmatpush1.msra.mxu0 0.0
  %230 = vmatprep.subr.mxu0 0.0
  %231 = vmatpush1.msra.mxu0 0.0
  %232 = vmatprep.subr.mxu0 0.0
  %233 = vmatpush1.msra.mxu0 0.0
  %234 = vmatprep.subr.mxu0 0.0
  %235 = vmatpush1.msra.mxu0 0.0
  %236 = vmatprep.mubr.f32.mxu0 0.0
  %237 = vmatmul.mubr.f32.gmra.mrb[0].mxu0 %v150
  %v238 = vpop.f32.mrb[0].mxu0
  %v239 = vadd.f32 %v171, %v238
  %v240 = vpop.f32.mrb[0].mxu0
  %241 = vdwg.mxu0
  %243 = vset.pattern.permute.xlu0 68
  %244 = vperm.xlu0 %243, %v239
  %v245 = vpop.permute.xlu0 %244
  %v247 = vsub.f32 %v239, %v245
  %v248 = vmul.f32 %v247, %v247
  %vm249 = vcmask 523264
  %v250 = vsel %vm249, %v248, 0.0
  %251 = vadd.xlane.f32.xlu0 %v250
  %v252 = vpop.xlane.xlu0 %251
  %v253 = vrcp.pop 64.0
  %v254 = vmul.f32 %v252, %v253
  %v255 = vadd.f32 %v254, 1e-05
  %v256 = vrsqrt.pop %v255
  %v257 = vmul.f32 %v247, %v256
  %v258 = vld [vmem:[%s7 + $0x1] sm:$0x1]
  %v259 = vlaneseq
  %v260 = vshrl.u32 %v259, 7
  %v261 = vsub.s32 0, %v260
  %v262 = vrot.slane %v258, %v261
  %v263 = vmul.f32 %v257, %v262
  %v264 = vld [vmem:[%s8 + $0x1] sm:$0x1]
  %v265 = vlaneseq
  %v266 = vshrl.u32 %v265, 7
  %v267 = vsub.s32 0, %v266
  %v268 = vrot.slane %v264, %v267
  %v269 = vadd.f32 %v263, %v268
  %v270 = vmax.f32 %v269, 0.0
  %v271 = vld [vmem:[%s3] sm:$0xff]
  %v272 = vld [vmem:[%s3 + $0x8] sm:$0xff]
  %v273 = vld [vmem:[%s3 + $0x10] sm:$0xff]
  %v274 = vld [vmem:[%s3 + $0x18] sm:$0xff]
  %v275 = vld [vmem:[%s3 + $0x20] sm:$0xff]
  %v276 = vld [vmem:[%s3 + $0x28] sm:$0xff]
  %v277 = vld [vmem:[%s3 + $0x30] sm:$0xff]
  %v278 = vld [vmem:[%s3 + $0x38] sm:$0xff]
  %v279 = vld [vmem:[%s6 + $0x2] sm:$0x1]
  %v280 = vlaneseq
  %v281 = vshrl.u32 %v280, 7
  %v282 = vsub.s32 0, %v281
  %v283 = vrot.slane %v279, %v282
  %v285 = vsel %vm249, %v270, 0
  %287 = vmatprep.subr.mxu0 0.0
  %288 = vmatpush1.msra.mxu0 %v271
  %289 = vmatprep.subr.mxu0 0.0
  %290 = vmatpush1.msra.mxu0 %v272
  %291 = vmatprep.subr.mxu0 0.0
  %292 = vmatpush1.msra.mxu0 %v273
  %293 = vmatprep.subr.mxu0 0.0
  %294 = vmatpush1.msra.mxu0 %v274
  %295 = vmatprep.subr.mxu0 0.0
  %296 = vmatpush1.msra.mxu0 %v275
  %297 = vmatprep.subr.mxu0 0.0
  %298 = vmatpush1.msra.mxu0 %v276
  %299 = vmatprep.subr.mxu0 0.0
  %300 = vmatpush1.msra.mxu0 %v277
  %301 = vmatprep.subr.mxu0 0.0
  %302 = vmatpush1.msra.mxu0 %v278
  %303 = vmatprep.subr.mxu0 0.0
  %304 = vmatpush1.msra.mxu0 0.0
  %305 = vmatprep.subr.mxu0 0.0
  %306 = vmatpush1.msra.mxu0 0.0
  %307 = vmatprep.subr.mxu0 0.0
  %308 = vmatpush1.msra.mxu0 0.0
  %309 = vmatprep.subr.mxu0 0.0
  %310 = vmatpush1.msra.mxu0 0.0
  %311 = vmatprep.subr.mxu0 0.0
  %312 = vmatpush1.msra.mxu0 0.0
  %313 = vmatprep.subr.mxu0 0.0
  %314 = vmatpush1.msra.mxu0 0.0
  %315 = vmatprep.subr.mxu0 0.0
  %316 = vmatpush1.msra.mxu0 0.0
  %317 = vmatprep.subr.mxu0 0.0
  %318 = vmatpush1.msra.mxu0 0.0
  %319 = vmatprep.subr.mxu0 0.0
  %320 = vmatpush1.msra.mxu0 0.0
  %321 = vmatprep.subr.mxu0 0.0
  %322 = vmatpush1.msra.mxu0 0.0
  %323 = vmatprep.subr.mxu0 0.0
  %324 = vmatpush1.msra.mxu0 0.0
  %325 = vmatprep.subr.mxu0 0.0
  %326 = vmatpush1.msra.mxu0 0.0
  %327 = vmatprep.subr.mxu0 0.0
  %328 = vmatpush1.msra.mxu0 0.0
  %329 = vmatprep.subr.mxu0 0.0
  %330 = vmatpush1.msra.mxu0 0.0
  %331 = vmatprep.subr.mxu0 0.0
  %332 = vmatpush1.msra.mxu0 0.0
  %333 = vmatprep.subr.mxu0 0.0
  %334 = vmatpush1.msra.mxu0 0.0
  %335 = vmatprep.subr.mxu0 0.0
  %336 = vmatpush1.msra.mxu0 0.0
  %337 = vmatprep.subr.mxu0 0.0
  %338 = vmatpush1.msra.mxu0 0.0
  %339 = vmatprep.subr.mxu0 0.0
  %340 = vmatpush1.msra.mxu0 0.0
  %341 = vmatprep.subr.mxu0 0.0
  %342 = vmatpush1.msra.mxu0 0.0
  %343 = vmatprep.subr.mxu0 0.0
  %344 = vmatpush1.msra.mxu0 0.0
  %345 = vmatprep.subr.mxu0 0.0
  %346 = vmatpush1.msra.mxu0 0.0
  %347 = vmatprep.subr.mxu0 0.0
  %348 = vmatpush1.msra.mxu0 0.0
  %349 = vmatprep.subr.mxu0 0.0
  %350 = vmatpush1.msra.mxu0 0.0
  %351 = vmatprep.mubr.f32.mxu0 0.0
  %352 = vmatmul.mubr.f32.gmra.mrb[0].mxu0 %v285
  %v353 = vpop.f32.mrb[0].mxu0
  %v354 = vadd.f32 %v283, %v353
  %v355 = vpop.f32.mrb[0].mxu0
  %356 = vdwg.mxu0
  %358 = vset.pattern.permute.xlu0 36
  %359 = vperm.xlu0 %358, %v354
  %v360 = vpop.permute.xlu0 %359
  %v362 = vsub.f32 %v354, %v360
  %v363 = vmul.f32 %v362, %v362
  %vm364 = vcmask 261120
  %v365 = vsel %vm364, %v363, 0.0
  %366 = vadd.xlane.f32.xlu0 %v365
  %v367 = vpop.xlane.xlu0 %366
  %v368 = vrcp.pop 32.0
  %v369 = vmul.f32 %v367, %v368
  %v370 = vadd.f32 %v369, 1e-05
  %v371 = vrsqrt.pop %v370
  %v372 = vmul.f32 %v362, %v371
  %v373 = vld [vmem:[%s7 + $0x2] sm:$0x1]
  %v374 = vlaneseq
  %v375 = vshrl.u32 %v374, 7
  %v376 = vsub.s32 0, %v375
  %v377 = vrot.slane %v373, %v376
  %v378 = vmul.f32 %v372, %v377
  %v379 = vld [vmem:[%s8 + $0x2] sm:$0x1]
  %v380 = vlaneseq
  %v381 = vshrl.u32 %v380, 7
  %v382 = vsub.s32 0, %v381
  %v383 = vrot.slane %v379, %v382
  %v384 = vadd.f32 %v378, %v383
  %v385 = vmax.f32 %v384, 0.0
  %386 = vrot.lane.b32.xlu0 %v354, 32
  %v387 = vpop.permute.xlu0 %386
  %v389 = vadd.f32 %v239, %v387
  %v390 = vld [vmem:[%s4] sm:$0xff]
  %v391 = vld [vmem:[%s4 + $0x8] sm:$0xff]
  %v392 = vld [vmem:[%s4 + $0x10] sm:$0xff]
  %v393 = vld [vmem:[%s4 + $0x18] sm:$0xff]
  %v394 = vld [vmem:[%s6 + $0x3] sm:$0x1]
  %v395 = vlaneseq
  %v396 = vshrl.u32 %v395, 7
  %v397 = vsub.s32 0, %v396
  %v398 = vrot.slane %v394, %v397
  %v400 = vsel %vm364, %v385, 0
  %402 = vmatprep.subr.mxu0 0.0
  %403 = vmatpush1.msra.mxu0 %v390
  %404 = vmatprep.subr.mxu0 0.0
  %405 = vmatpush1.msra.mxu0 %v391
  %406 = vmatprep.subr.mxu0 0.0
  %407 = vmatpush1.msra.mxu0 %v392
  %408 = vmatprep.subr.mxu0 0.0
  %409 = vmatpush1.msra.mxu0 %v393
  %410 = vmatprep.subr.mxu0 0.0
  %411 = vmatpush1.msra.mxu0 0.0
  %412 = vmatprep.subr.mxu0 0.0
  %413 = vmatpush1.msra.mxu0 0.0
  %414 = vmatprep.subr.mxu0 0.0
  %415 = vmatpush1.msra.mxu0 0.0
  %416 = vmatprep.subr.mxu0 0.0
  %417 = vmatpush1.msra.mxu0 0.0
  %418 = vmatprep.subr.mxu0 0.0
  %419 = vmatpush1.msra.mxu0 0.0
  %420 = vmatprep.subr.mxu0 0.0
  %421 = vmatpush1.msra.mxu0 0.0
  %422 = vmatprep.subr.mxu0 0.0
  %423 = vmatpush1.msra.mxu0 0.0
  %424 = vmatprep.subr.mxu0 0.0
  %425 = vmatpush1.msra.mxu0 0.0
  %426 = vmatprep.subr.mxu0 0.0
  %427 = vmatpush1.msra.mxu0 0.0
  %428 = vmatprep.subr.mxu0 0.0
  %429 = vmatpush1.msra.mxu0 0.0
  %430 = vmatprep.subr.mxu0 0.0
  %431 = vmatpush1.msra.mxu0 0.0
  %432 = vmatprep.subr.mxu0 0.0
  %433 = vmatpush1.msra.mxu0 0.0
  %434 = vmatprep.subr.mxu0 0.0
  %435 = vmatpush1.msra.mxu0 0.0
  %436 = vmatprep.subr.mxu0 0.0
  %437 = vmatpush1.msra.mxu0 0.0
  %438 = vmatprep.subr.mxu0 0.0
  %439 = vmatpush1.msra.mxu0 0.0
  %440 = vmatprep.subr.mxu0 0.0
  %441 = vmatpush1.msra.mxu0 0.0
  %442 = vmatprep.subr.mxu0 0.0
  %443 = vmatpush1.msra.mxu0 0.0
  %444 = vmatprep.subr.mxu0 0.0
  %445 = vmatpush1.msra.mxu0 0.0
  %446 = vmatprep.subr.mxu0 0.0
  %447 = vmatpush1.msra.mxu0 0.0
  %448 = vmatprep.subr.mxu0 0.0
  %449 = vmatpush1.msra.mxu0 0.0
  %450 = vmatprep.subr.mxu0 0.0
  %451 = vmatpush1.msra.mxu0 0.0
  %452 = vmatprep.subr.mxu0 0.0
  %453 = vmatpush1.msra.mxu0 0.0
  %454 = vmatprep.subr.mxu0 0.0
  %455 = vmatpush1.msra.mxu0 0.0
  %456 = vmatprep.subr.mxu0 0.0
  %457 = vmatpush1.msra.mxu0 0.0
  %458 = vmatprep.subr.mxu0 0.0
  %459 = vmatpush1.msra.mxu0 0.0
  %460 = vmatprep.subr.mxu0 0.0
  %461 = vmatpush1.msra.mxu0 0.0
  %462 = vmatprep.subr.mxu0 0.0
  %463 = vmatpush1.msra.mxu0 0.0
  %464 = vmatprep.subr.mxu0 0.0
  %465 = vmatpush1.msra.mxu0 0.0
  %466 = vmatprep.mubr.f32.mxu0 0.0
  %467 = vmatmul.mubr.f32.gmra.mrb[0].mxu0 %v400
  %v468 = vpop.f32.mrb[0].mxu0
  %v469 = vadd.f32 %v398, %v468
  %v470 = vpop.f32.mrb[0].mxu0
  %471 = vdwg.mxu0
  %473 = vset.pattern.permute.xlu0 12
  %474 = vperm.xlu0 %473, %v469
  %v475 = vpop.permute.xlu0 %474
  %v477 = vsub.f32 %v469, %v475
  %v478 = vmul.f32 %v477, %v477
  %vm479 = vcmask 64512
  %v480 = vsel %vm479, %v478, 0.0
  %481 = vadd.xlane.f32.xlu0 %v480
  %v482 = vpop.xlane.xlu0 %481
  %v483 = vrcp.pop 8.0
  %v484 = vmul.f32 %v482, %v483
  %v485 = vadd.f32 %v484, 1e-05
  %v486 = vrsqrt.pop %v485
  %v487 = vmul.f32 %v477, %v486
  %v488 = vld [vmem:[%s7 + $0x3] sm:$0x1]
  %v489 = vlaneseq
  %v490 = vshrl.u32 %v489, 7
  %v491 = vsub.s32 0, %v490
  %v492 = vrot.slane %v488, %v491
  %v493 = vmul.f32 %v487, %v492
  %v494 = vld [vmem:[%s8 + $0x3] sm:$0x1]
  %v495 = vlaneseq
  %v496 = vshrl.u32 %v495, 7
  %v497 = vsub.s32 0, %v496
  %v498 = vrot.slane %v494, %v497
  %v499 = vadd.f32 %v493, %v498
  %v500 = vmax.f32 %v499, 0.0
  %501 = vrot.lane.b32.xlu0 %v469, 56
  %v502 = vpop.permute.xlu0 %501
  %v504 = vadd.f32 %v389, %v502
  %v505 = vld [vmem:[%s5] sm:$0xff]
  %v507 = vsel %vm479, %v500, 0
  %509 = vmatprep.subr.mxu0 0.0
  %510 = vmatpush1.msra.mxu0 %v505
  %511 = vmatprep.subr.mxu0 0.0
  %512 = vmatpush1.msra.mxu0 0.0
  %513 = vmatprep.subr.mxu0 0.0
  %514 = vmatpush1.msra.mxu0 0.0
  %515 = vmatprep.subr.mxu0 0.0
  %516 = vmatpush1.msra.mxu0 0.0
  %517 = vmatprep.subr.mxu0 0.0
  %518 = vmatpush1.msra.mxu0 0.0
  %519 = vmatprep.subr.mxu0 0.0
  %520 = vmatpush1.msra.mxu0 0.0
  %521 = vmatprep.subr.mxu0 0.0
  %522 = vmatpush1.msra.mxu0 0.0
  %523 = vmatprep.subr.mxu0 0.0
  %524 = vmatpush1.msra.mxu0 0.0
  %525 = vmatprep.subr.mxu0 0.0
  %526 = vmatpush1.msra.mxu0 0.0
  %527 = vmatprep.subr.mxu0 0.0
  %528 = vmatpush1.msra.mxu0 0.0
  %529 = vmatprep.subr.mxu0 0.0
  %530 = vmatpush1.msra.mxu0 0.0
  %531 = vmatprep.subr.mxu0 0.0
  %532 = vmatpush1.msra.mxu0 0.0
  %533 = vmatprep.subr.mxu0 0.0
  %534 = vmatpush1.msra.mxu0 0.0
  %535 = vmatprep.subr.mxu0 0.0
  %536 = vmatpush1.msra.mxu0 0.0
  %537 = vmatprep.subr.mxu0 0.0
  %538 = vmatpush1.msra.mxu0 0.0
  %539 = vmatprep.subr.mxu0 0.0
  %540 = vmatpush1.msra.mxu0 0.0
  %541 = vmatprep.subr.mxu0 0.0
  %542 = vmatpush1.msra.mxu0 0.0
  %543 = vmatprep.subr.mxu0 0.0
  %544 = vmatpush1.msra.mxu0 0.0
  %545 = vmatprep.subr.mxu0 0.0
  %546 = vmatpush1.msra.mxu0 0.0
  %547 = vmatprep.subr.mxu0 0.0
  %548 = vmatpush1.msra.mxu0 0.0
  %549 = vmatprep.subr.mxu0 0.0
  %550 = vmatpush1.msra.mxu0 0.0
  %551 = vmatprep.subr.mxu0 0.0
  %552 = vmatpush1.msra.mxu0 0.0
  %553 = vmatprep.subr.mxu0 0.0
  %554 = vmatpush1.msra.mxu0 0.0
  %555 = vmatprep.subr.mxu0 0.0
  %556 = vmatpush1.msra.mxu0 0.0
  %557 = vmatprep.subr.mxu0 0.0
  %558 = vmatpush1.msra.mxu0 0.0
  %559 = vmatprep.subr.mxu0 0.0
  %560 = vmatpush1.msra.mxu0 0.0
  %561 = vmatprep.subr.mxu0 0.0
  %562 = vmatpush1.msra.mxu0 0.0
  %563 = vmatprep.subr.mxu0 0.0
  %564 = vmatpush1.msra.mxu0 0.0
  %565 = vmatprep.subr.mxu0 0.0
  %566 = vmatpush1.msra.mxu0 0.0
  %567 = vmatprep.subr.mxu0 0.0
  %568 = vmatpush1.msra.mxu0 0.0
  %569 = vmatprep.subr.mxu0 0.0
  %570 = vmatpush1.msra.mxu0 0.0
  %571 = vmatprep.subr.mxu0 0.0
  %572 = vmatpush1.msra.mxu0 0.0
  %573 = vmatprep.mubr.f32.mxu0 0.0
  %574 = vmatmul.mubr.f32.gmra.mrb[0].mxu0 %v507
  %v575 = vpop.f32.mrb[0].mxu0
  %v576 = vadd.f32 0.0, %v575
  %v577 = vpop.f32.mrb[0].mxu0
  %578 = vdwg.mxu0
  %580 = vrot.lane.b32.xlu0 %v576, 64
  %v581 = vpop.permute.xlu0 %580
  %v583 = vadd.f32 %v504, %v581
  %585 = vrot.lane.b32.xlu0 %v583, 64
  %v586 = vpop.permute.xlu0 %585
  %vm588 = vcmask 31744
  %589 = vst.msk [vmem:[%s9] sm:$0xff] %vm588, %v586
  %v590 = vld [vmem:[%s0 + $0x8] sm:$0xff]
  %v591 = vld [vmem:[%s1] sm:$0xff]
  %v592 = vld [vmem:[%s1 + $0x8] sm:$0xff]
  %v593 = vld [vmem:[%s1 + $0x10] sm:$0xff]
  %v594 = vld [vmem:[%s1 + $0x18] sm:$0xff]
  %v595 = vld [vmem:[%s6] ss:$4 sm:$0x3]
  %v597 = vlaneseq
  %v598 = vshrl.u32 %v597, 7
  %v599 = vsub.s32 0, %v598
  %v600 = vrot.slane %v595, %v599
  %v601 = vlaneseq
  %v602 = vshrl.u32 %v601, 7
  %v603 = vsub.s32 1, %v602
  %v604 = vrot.slane %v595, %v603
  %v608 = vsel %vm49, %v590, 0
  %610 = vmatprep.subr.mxu0 %v592
  %611 = vmatpush1.msra.mxu0 %v591
  %612 = vmatprep.subr.mxu0 %v594
  %613 = vmatpush1.msra.mxu0 %v593
  %614 = vmatprep.subr.mxu0 0.0
  %615 = vmatpush1.msra.mxu0 0.0
  %616 = vmatprep.subr.mxu0 0.0
  %617 = vmatpush1.msra.mxu0 0.0
  %618 = vmatprep.subr.mxu0 0.0
  %619 = vmatpush1.msra.mxu0 0.0
  %620 = vmatprep.subr.mxu0 0.0
  %621 = vmatpush1.msra.mxu0 0.0
  %622 = vmatprep.subr.mxu0 0.0
  %623 = vmatpush1.msra.mxu0 0.0
  %624 = vmatprep.subr.mxu0 0.0
  %625 = vmatpush1.msra.mxu0 0.0
  %626 = vmatprep.subr.mxu0 0.0
  %627 = vmatpush1.msra.mxu0 0.0
  %628 = vmatprep.subr.mxu0 0.0
  %629 = vmatpush1.msra.mxu0 0.0
  %630 = vmatprep.subr.mxu0 0.0
  %631 = vmatpush1.msra.mxu0 0.0
  %632 = vmatprep.subr.mxu0 0.0
  %633 = vmatpush1.msra.mxu0 0.0
  %634 = vmatprep.subr.mxu0 0.0
  %635 = vmatpush1.msra.mxu0 0.0
  %636 = vmatprep.subr.mxu0 0.0
  %637 = vmatpush1.msra.mxu0 0.0
  %638 = vmatprep.subr.mxu0 0.0
  %639 = vmatpush1.msra.mxu0 0.0
  %640 = vmatprep.subr.mxu0 0.0
  %641 = vmatpush1.msra.mxu0 0.0
  %642 = vmatprep.subr.mxu0 0.0
  %643 = vmatpush1.msra.mxu0 0.0
  %644 = vmatprep.subr.mxu0 0.0
  %645 = vmatpush1.msra.mxu0 0.0
  %646 = vmatprep.subr.mxu0 0.0
  %647 = vmatpush1.msra.mxu0 0.0
  %648 = vmatprep.subr.mxu0 0.0
  %649 = vmatpush1.msra.mxu0 0.0
  %650 = vmatprep.subr.mxu0 0.0
  %651 = vmatpush1.msra.mxu0 0.0
  %652 = vmatprep.subr.mxu0 0.0
  %653 = vmatpush1.msra.mxu0 0.0
  %654 = vmatprep.subr.mxu0 0.0
  %655 = vmatpush1.msra.mxu0 0.0
  %656 = vmatprep.subr.mxu0 0.0
  %657 = vmatpush1.msra.mxu0 0.0
  %658 = vmatprep.subr.mxu0 0.0
  %659 = vmatpush1.msra.mxu0 0.0
  %660 = vmatprep.subr.mxu0 0.0
  %661 = vmatpush1.msra.mxu0 0.0
  %662 = vmatprep.subr.mxu0 0.0
  %663 = vmatpush1.msra.mxu0 0.0
  %664 = vmatprep.subr.mxu0 0.0
  %665 = vmatpush1.msra.mxu0 0.0
  %666 = vmatprep.subr.mxu0 0.0
  %667 = vmatpush1.msra.mxu0 0.0
  %668 = vmatprep.subr.mxu0 0.0
  %669 = vmatpush1.msra.mxu0 0.0
  %670 = vmatprep.subr.mxu0 0.0
  %671 = vmatpush1.msra.mxu0 0.0
  %672 = vmatprep.subr.mxu0 0.0
  %673 = vmatpush1.msra.mxu0 0.0
  %674 = vmatprep.mubr.f32.mxu0 0.0
  %675 = vmatmul.mubr.f32.gmra.mrb[0].mxu0 %v608
  %v676 = vpop.f32.mrb[0].mxu0
  %v677 = vadd.f32 %v600, %v676
  %v678 = vpop.f32.mrb[0].mxu0
  %v679 = vadd.f32 %v604, %v678
  %680 = vdwg.mxu0
  %682 = vset.pattern.permute.xlu0 0
  %683 = vperm.xlu0 %682, %v679
  %v684 = vpop.permute.xlu0 %683
  %v686 = vsub.f32 %v677, %v684
  %v687 = vmul.f32 %v686, %v686
  %688 = vadd.xlane.f32.xlu0 %v687
  %v689 = vpop.xlane.xlu0 %688
  %v690 = vmul.f32 %v689, %v133
  %v691 = vadd.f32 %v690, 1e-05
  %v692 = vrsqrt.pop %v691
  %v693 = vmul.f32 %v686, %v692
  %v694 = vld [vmem:[%s7] sm:$0x1]
  %v695 = vlaneseq
  %v696 = vshrl.u32 %v695, 7
  %v697 = vsub.s32 0, %v696
  %v698 = vrot.slane %v694, %v697
  %v699 = vmul.f32 %v693, %v698
  %v700 = vld [vmem:[%s8] sm:$0x1]
  %v701 = vlaneseq
  %v702 = vshrl.u32 %v701, 7
  %v703 = vsub.s32 0, %v702
  %v704 = vrot.slane %v700, %v703
  %v705 = vadd.f32 %v699, %v704
  %v706 = vmax.f32 %v705, 0.0
  %v707 = vld [vmem:[%s2] sm:$0xff]
  %v708 = vld [vmem:[%s2 + $0x8] sm:$0xff]
  %v709 = vld [vmem:[%s2 + $0x10] sm:$0xff]
  %v710 = vld [vmem:[%s2 + $0x18] sm:$0xff]
  %v711 = vld [vmem:[%s2 + $0x20] sm:$0xff]
  %v712 = vld [vmem:[%s2 + $0x28] sm:$0xff]
  %v713 = vld [vmem:[%s2 + $0x30] sm:$0xff]
  %v714 = vld [vmem:[%s2 + $0x38] sm:$0xff]
  %v715 = vld [vmem:[%s2 + $0x40] sm:$0xff]
  %v716 = vld [vmem:[%s2 + $0x48] sm:$0xff]
  %v717 = vld [vmem:[%s2 + $0x50] sm:$0xff]
  %v718 = vld [vmem:[%s2 + $0x58] sm:$0xff]
  %v719 = vld [vmem:[%s2 + $0x60] sm:$0xff]
  %v720 = vld [vmem:[%s2 + $0x68] sm:$0xff]
  %v721 = vld [vmem:[%s2 + $0x70] sm:$0xff]
  %v722 = vld [vmem:[%s2 + $0x78] sm:$0xff]
  %v723 = vld [vmem:[%s6 + $0x1] sm:$0x1]
  %v724 = vlaneseq
  %v725 = vshrl.u32 %v724, 7
  %v726 = vsub.s32 0, %v725
  %v727 = vrot.slane %v723, %v726
  %728 = vmatprep.subr.mxu0 0.0
  %729 = vmatpush1.msra.mxu0 %v707
  %730 = vmatprep.subr.mxu0 0.0
  %731 = vmatpush1.msra.mxu0 %v708
  %732 = vmatprep.subr.mxu0 0.0
  %733 = vmatpush1.msra.mxu0 %v709
  %734 = vmatprep.subr.mxu0 0.0
  %735 = vmatpush1.msra.mxu0 %v710
  %736 = vmatprep.subr.mxu0 0.0
  %737 = vmatpush1.msra.mxu0 %v711
  %738 = vmatprep.subr.mxu0 0.0
  %739 = vmatpush1.msra.mxu0 %v712
  %740 = vmatprep.subr.mxu0 0.0
  %741 = vmatpush1.msra.mxu0 %v713
  %742 = vmatprep.subr.mxu0 0.0
  %743 = vmatpush1.msra.mxu0 %v714
  %744 = vmatprep.subr.mxu0 0.0
  %745 = vmatpush1.msra.mxu0 %v715
  %746 = vmatprep.subr.mxu0 0.0
  %747 = vmatpush1.msra.mxu0 %v716
  %748 = vmatprep.subr.mxu0 0.0
  %749 = vmatpush1.msra.mxu0 %v717
  %750 = vmatprep.subr.mxu0 0.0
  %751 = vmatpush1.msra.mxu0 %v718
  %752 = vmatprep.subr.mxu0 0.0
  %753 = vmatpush1.msra.mxu0 %v719
  %754 = vmatprep.subr.mxu0 0.0
  %755 = vmatpush1.msra.mxu0 %v720
  %756 = vmatprep.subr.mxu0 0.0
  %757 = vmatpush1.msra.mxu0 %v721
  %758 = vmatprep.subr.mxu0 0.0
  %759 = vmatpush1.msra.mxu0 %v722
  %760 = vmatprep.subr.mxu0 0.0
  %761 = vmatpush1.msra.mxu0 0.0
  %762 = vmatprep.subr.mxu0 0.0
  %763 = vmatpush1.msra.mxu0 0.0
  %764 = vmatprep.subr.mxu0 0.0
  %765 = vmatpush1.msra.mxu0 0.0
  %766 = vmatprep.subr.mxu0 0.0
  %767 = vmatpush1.msra.mxu0 0.0
  %768 = vmatprep.subr.mxu0 0.0
  %769 = vmatpush1.msra.mxu0 0.0
  %770 = vmatprep.subr.mxu0 0.0
  %771 = vmatpush1.msra.mxu0 0.0
  %772 = vmatprep.subr.mxu0 0.0
  %773 = vmatpush1.msra.mxu0 0.0
  %774 = vmatprep.subr.mxu0 0.0
  %775 = vmatpush1.msra.mxu0 0.0
  %776 = vmatprep.subr.mxu0 0.0
  %777 = vmatpush1.msra.mxu0 0.0
  %778 = vmatprep.subr.mxu0 0.0
  %779 = vmatpush1.msra.mxu0 0.0
  %780 = vmatprep.subr.mxu0 0.0
  %781 = vmatpush1.msra.mxu0 0.0
  %782 = vmatprep.subr.mxu0 0.0
  %783 = vmatpush1.msra.mxu0 0.0
  %784 = vmatprep.subr.mxu0 0.0
  %785 = vmatpush1.msra.mxu0 0.0
  %786 = vmatprep.subr.mxu0 0.0
  %787 = vmatpush1.msra.mxu0 0.0
  %788 = vmatprep.subr.mxu0 0.0
  %789 = vmatpush1.msra.mxu0 0.0
  %790 = vmatprep.subr.mxu0 0.0
  %791 = vmatpush1.msra.mxu0 0.0
  %792 = vmatprep.mubr.f32.mxu0 0.0
  %793 = vmatmul.mubr.f32.gmra.mrb[0].mxu0 %v706
  %v794 = vpop.f32.mrb[0].mxu0
  %v795 = vadd.f32 %v727, %v794
  %v796 = vpop.f32.mrb[0].mxu0
  %797 = vdwg.mxu0
  %799 = vset.pattern.permute.xlu0 68
  %800 = vperm.xlu0 %799, %v795
  %v801 = vpop.permute.xlu0 %800
  %v803 = vsub.f32 %v795, %v801
  %v804 = vmul.f32 %v803, %v803
  %v805 = vsel %vm249, %v804, 0.0
  %806 = vadd.xlane.f32.xlu0 %v805
  %v807 = vpop.xlane.xlu0 %806
  %v808 = vmul.f32 %v807, %v253
  %v809 = vadd.f32 %v808, 1e-05
  %v810 = vrsqrt.pop %v809
  %v811 = vmul.f32 %v803, %v810
  %v812 = vld [vmem:[%s7 + $0x1] sm:$0x1]
  %v813 = vlaneseq
  %v814 = vshrl.u32 %v813, 7
  %v815 = vsub.s32 0, %v814
  %v816 = vrot.slane %v812, %v815
  %v817 = vmul.f32 %v811, %v816
  %v818 = vld [vmem:[%s8 + $0x1] sm:$0x1]
  %v819 = vlaneseq
  %v820 = vshrl.u32 %v819, 7
  %v821 = vsub.s32 0, %v820
  %v822 = vrot.slane %v818, %v821
  %v823 = vadd.f32 %v817, %v822
  %v824 = vmax.f32 %v823, 0.0
  %v825 = vld [vmem:[%s3] sm:$0xff]
  %v826 = vld [vmem:[%s3 + $0x8] sm:$0xff]
  %v827 = vld [vmem:[%s3 + $0x10] sm:$0xff]
  %v828 = vld [vmem:[%s3 + $0x18] sm:$0xff]
  %v829 = vld [vmem:[%s3 + $0x20] sm:$0xff]
  %v830 = vld [vmem:[%s3 + $0x28] sm:$0xff]
  %v831 = vld [vmem:[%s3 + $0x30] sm:$0xff]
  %v832 = vld [vmem:[%s3 + $0x38] sm:$0xff]
  %v833 = vld [vmem:[%s6 + $0x2] sm:$0x1]
  %v834 = vlaneseq
  %v835 = vshrl.u32 %v834, 7
  %v836 = vsub.s32 0, %v835
  %v837 = vrot.slane %v833, %v836
  %v839 = vsel %vm249, %v824, 0
  %841 = vmatprep.subr.mxu0 0.0
  %842 = vmatpush1.msra.mxu0 %v825
  %843 = vmatprep.subr.mxu0 0.0
  %844 = vmatpush1.msra.mxu0 %v826
  %845 = vmatprep.subr.mxu0 0.0
  %846 = vmatpush1.msra.mxu0 %v827
  %847 = vmatprep.subr.mxu0 0.0
  %848 = vmatpush1.msra.mxu0 %v828
  %849 = vmatprep.subr.mxu0 0.0
  %850 = vmatpush1.msra.mxu0 %v829
  %851 = vmatprep.subr.mxu0 0.0
  %852 = vmatpush1.msra.mxu0 %v830
  %853 = vmatprep.subr.mxu0 0.0
  %854 = vmatpush1.msra.mxu0 %v831
  %855 = vmatprep.subr.mxu0 0.0
  %856 = vmatpush1.msra.mxu0 %v832
  %857 = vmatprep.subr.mxu0 0.0
  %858 = vmatpush1.msra.mxu0 0.0
  %859 = vmatprep.subr.mxu0 0.0
  %860 = vmatpush1.msra.mxu0 0.0
  %861 = vmatprep.subr.mxu0 0.0
  %862 = vmatpush1.msra.mxu0 0.0
  %863 = vmatprep.subr.mxu0 0.0
  %864 = vmatpush1.msra.mxu0 0.0
  %865 = vmatprep.subr.mxu0 0.0
  %866 = vmatpush1.msra.mxu0 0.0
  %867 = vmatprep.subr.mxu0 0.0
  %868 = vmatpush1.msra.mxu0 0.0
  %869 = vmatprep.subr.mxu0 0.0
  %870 = vmatpush1.msra.mxu0 0.0
  %871 = vmatprep.subr.mxu0 0.0
  %872 = vmatpush1.msra.mxu0 0.0
  %873 = vmatprep.subr.mxu0 0.0
  %874 = vmatpush1.msra.mxu0 0.0
  %875 = vmatprep.subr.mxu0 0.0
  %876 = vmatpush1.msra.mxu0 0.0
  %877 = vmatprep.subr.mxu0 0.0
  %878 = vmatpush1.msra.mxu0 0.0
  %879 = vmatprep.subr.mxu0 0.0
  %880 = vmatpush1.msra.mxu0 0.0
  %881 = vmatprep.subr.mxu0 0.0
  %882 = vmatpush1.msra.mxu0 0.0
  %883 = vmatprep.subr.mxu0 0.0
  %884 = vmatpush1.msra.mxu0 0.0
  %885 = vmatprep.subr.mxu0 0.0
  %886 = vmatpush1.msra.mxu0 0.0
  %887 = vmatprep.subr.mxu0 0.0
  %888 = vmatpush1.msra.mxu0 0.0
  %889 = vmatprep.subr.mxu0 0.0
  %890 = vmatpush1.msra.mxu0 0.0
  %891 = vmatprep.subr.mxu0 0.0
  %892 = vmatpush1.msra.mxu0 0.0
  %893 = vmatprep.subr.mxu0 0.0
  %894 = vmatpush1.msra.mxu0 0.0
  %895 = vmatprep.subr.mxu0 0.0
  %896 = vmatpush1.msra.mxu0 0.0
  %897 = vmatprep.subr.mxu0 0.0
  %898 = vmatpush1.msra.mxu0 0.0
  %899 = vmatprep.subr.mxu0 0.0
  %900 = vmatpush1.msra.mxu0 0.0
  %901 = vmatprep.subr.mxu0 0.0
  %902 = vmatpush1.msra.mxu0 0.0
  %903 = vmatprep.subr.mxu0 0.0
  %904 = vmatpush1.msra.mxu0 0.0
  %905 = vmatprep.mubr.f32.mxu0 0.0
  %906 = vmatmul.mubr.f32.gmra.mrb[0].mxu0 %v839
  %v907 = vpop.f32.mrb[0].mxu0
  %v908 = vadd.f32 %v837, %v907
  %v909 = vpop.f32.mrb[0].mxu0
  %910 = vdwg.mxu0
  %912 = vset.pattern.permute.xlu0 36
  %913 = vperm.xlu0 %912, %v908
  %v914 = vpop.permute.xlu0 %913
  %v916 = vsub.f32 %v908, %v914
  %v917 = vmul.f32 %v916, %v916
  %v918 = vsel %vm364, %v917, 0.0
  %919 = vadd.xlane.f32.xlu0 %v918
  %v920 = vpop.xlane.xlu0 %919
  %v921 = vmul.f32 %v920, %v368
  %v922 = vadd.f32 %v921, 1e-05
  %v923 = vrsqrt.pop %v922
  %v924 = vmul.f32 %v916, %v923
  %v925 = vld [vmem:[%s7 + $0x2] sm:$0x1]
  %v926 = vlaneseq
  %v927 = vshrl.u32 %v926, 7
  %v928 = vsub.s32 0, %v927
  %v929 = vrot.slane %v925, %v928
  %v930 = vmul.f32 %v924, %v929
  %v931 = vld [vmem:[%s8 + $0x2] sm:$0x1]
  %v932 = vlaneseq
  %v933 = vshrl.u32 %v932, 7
  %v934 = vsub.s32 0, %v933
  %v935 = vrot.slane %v931, %v934
  %v936 = vadd.f32 %v930, %v935
  %v937 = vmax.f32 %v936, 0.0
  %938 = vrot.lane.b32.xlu0 %v908, 32
  %v939 = vpop.permute.xlu0 %938
  %v941 = vadd.f32 %v795, %v939
  %v942 = vld [vmem:[%s4] sm:$0xff]
  %v943 = vld [vmem:[%s4 + $0x8] sm:$0xff]
  %v944 = vld [vmem:[%s4 + $0x10] sm:$0xff]
  %v945 = vld [vmem:[%s4 + $0x18] sm:$0xff]
  %v946 = vld [vmem:[%s6 + $0x3] sm:$0x1]
  %v947 = vlaneseq
  %v948 = vshrl.u32 %v947, 7
  %v949 = vsub.s32 0, %v948
  %v950 = vrot.slane %v946, %v949
  %v952 = vsel %vm364, %v937, 0
  %954 = vmatprep.subr.mxu0 0.0
  %955 = vmatpush1.msra.mxu0 %v942
  %956 = vmatprep.subr.mxu0 0.0
  %957 = vmatpush1.msra.mxu0 %v943
  %958 = vmatprep.subr.mxu0 0.0
  %959 = vmatpush1.msra.mxu0 %v944
  %960 = vmatprep.subr.mxu0 0.0
  %961 = vmatpush1.msra.mxu0 %v945
  %962 = vmatprep.subr.mxu0 0.0
  %963 = vmatpush1.msra.mxu0 0.0
  %964 = vmatprep.subr.mxu0 0.0
  %965 = vmatpush1.msra.mxu0 0.0
  %966 = vmatprep.subr.mxu0 0.0
  %967 = vmatpush1.msra.mxu0 0.0
  %968 = vmatprep.subr.mxu0 0.0
  %969 = vmatpush1.msra.mxu0 0.0
  %970 = vmatprep.subr.mxu0 0.0
  %971 = vmatpush1.msra.mxu0 0.0
  %972 = vmatprep.subr.mxu0 0.0
  %973 = vmatpush1.msra.mxu0 0.0
  %974 = vmatprep.subr.mxu0 0.0
  %975 = vmatpush1.msra.mxu0 0.0
  %976 = vmatprep.subr.mxu0 0.0
  %977 = vmatpush1.msra.mxu0 0.0
  %978 = vmatprep.subr.mxu0 0.0
  %979 = vmatpush1.msra.mxu0 0.0
  %980 = vmatprep.subr.mxu0 0.0
  %981 = vmatpush1.msra.mxu0 0.0
  %982 = vmatprep.subr.mxu0 0.0
  %983 = vmatpush1.msra.mxu0 0.0
  %984 = vmatprep.subr.mxu0 0.0
  %985 = vmatpush1.msra.mxu0 0.0
  %986 = vmatprep.subr.mxu0 0.0
  %987 = vmatpush1.msra.mxu0 0.0
  %988 = vmatprep.subr.mxu0 0.0
  %989 = vmatpush1.msra.mxu0 0.0
  %990 = vmatprep.subr.mxu0 0.0
  %991 = vmatpush1.msra.mxu0 0.0
  %992 = vmatprep.subr.mxu0 0.0
  %993 = vmatpush1.msra.mxu0 0.0
  %994 = vmatprep.subr.mxu0 0.0
  %995 = vmatpush1.msra.mxu0 0.0
  %996 = vmatprep.subr.mxu0 0.0
  %997 = vmatpush1.msra.mxu0 0.0
  %998 = vmatprep.subr.mxu0 0.0
  %999 = vmatpush1.msra.mxu0 0.0
  %1000 = vmatprep.subr.mxu0 0.0
  %1001 = vmatpush1.msra.mxu0 0.0
  %1002 = vmatprep.subr.mxu0 0.0
  %1003 = vmatpush1.msra.mxu0 0.0
  %1004 = vmatprep.subr.mxu0 0.0
  %1005 = vmatpush1.msra.mxu0 0.0
  %1006 = vmatprep.subr.mxu0 0.0
  %1007 = vmatpush1.msra.mxu0 0.0
  %1008 = vmatprep.subr.mxu0 0.0
  %1009 = vmatpush1.msra.mxu0 0.0
  %1010 = vmatprep.subr.mxu0 0.0
  %1011 = vmatpush1.msra.mxu0 0.0
  %1012 = vmatprep.subr.mxu0 0.0
  %1013 = vmatpush1.msra.mxu0 0.0
  %1014 = vmatprep.subr.mxu0 0.0
  %1015 = vmatpush1.msra.mxu0 0.0
  %1016 = vmatprep.subr.mxu0 0.0
  %1017 = vmatpush1.msra.mxu0 0.0
  %1018 = vmatprep.mubr.f32.mxu0 0.0
  %1019 = vmatmul.mubr.f32.gmra.mrb[0].mxu0 %v952
  %v1020 = vpop.f32.mrb[0].mxu0
  %v1021 = vadd.f32 %v950, %v1020
  %v1022 = vpop.f32.mrb[0].mxu0
  %1023 = vdwg.mxu0
  %1025 = vset.pattern.permute.xlu0 12
  %1026 = vperm.xlu0 %1025, %v1021
  %v1027 = vpop.permute.xlu0 %1026
  %v1029 = vsub.f32 %v1021, %v1027
  %v1030 = vmul.f32 %v1029, %v1029
  %v1031 = vsel %vm479, %v1030, 0.0
  %1032 = vadd.xlane.f32.xlu0 %v1031
  %v1033 = vpop.xlane.xlu0 %1032
  %v1034 = vmul.f32 %v1033, %v483
  %v1035 = vadd.f32 %v1034, 1e-05
  %v1036 = vrsqrt.pop %v1035
  %v1037 = vmul.f32 %v1029, %v1036
  %v1038 = vld [vmem:[%s7 + $0x3] sm:$0x1]
  %v1039 = vlaneseq
  %v1040 = vshrl.u32 %v1039, 7
  %v1041 = vsub.s32 0, %v1040
  %v1042 = vrot.slane %v1038, %v1041
  %v1043 = vmul.f32 %v1037, %v1042
  %v1044 = vld [vmem:[%s8 + $0x3] sm:$0x1]
  %v1045 = vlaneseq
  %v1046 = vshrl.u32 %v1045, 7
  %v1047 = vsub.s32 0, %v1046
  %v1048 = vrot.slane %v1044, %v1047
  %v1049 = vadd.f32 %v1043, %v1048
  %v1050 = vmax.f32 %v1049, 0.0
  %1051 = vrot.lane.b32.xlu0 %v1021, 56
  %v1052 = vpop.permute.xlu0 %1051
  %v1054 = vadd.f32 %v941, %v1052
  %v1055 = vld [vmem:[%s5] sm:$0xff]
  %v1057 = vsel %vm479, %v1050, 0
  %1059 = vmatprep.subr.mxu0 0.0
  %1060 = vmatpush1.msra.mxu0 %v1055
  %1061 = vmatprep.subr.mxu0 0.0
  %1062 = vmatpush1.msra.mxu0 0.0
  %1063 = vmatprep.subr.mxu0 0.0
  %1064 = vmatpush1.msra.mxu0 0.0
  %1065 = vmatprep.subr.mxu0 0.0
  %1066 = vmatpush1.msra.mxu0 0.0
  %1067 = vmatprep.subr.mxu0 0.0
  %1068 = vmatpush1.msra.mxu0 0.0
  %1069 = vmatprep.subr.mxu0 0.0
  %1070 = vmatpush1.msra.mxu0 0.0
  %1071 = vmatprep.subr.mxu0 0.0
  %1072 = vmatpush1.msra.mxu0 0.0
  %1073 = vmatprep.subr.mxu0 0.0
  %1074 = vmatpush1.msra.mxu0 0.0
  %1075 = vmatprep.subr.mxu0 0.0
  %1076 = vmatpush1.msra.mxu0 0.0
  %1077 = vmatprep.subr.mxu0 0.0
  %1078 = vmatpush1.msra.mxu0 0.0
  %1079 = vmatprep.subr.mxu0 0.0
  %1080 = vmatpush1.msra.mxu0 0.0
  %1081 = vmatprep.subr.mxu0 0.0
  %1082 = vmatpush1.msra.mxu0 0.0
  %1083 = vmatprep.subr.mxu0 0.0
  %1084 = vmatpush1.msra.mxu0 0.0
  %1085 = vmatprep.subr.mxu0 0.0
  %1086 = vmatpush1.msra.mxu0 0.0
  %1087 = vmatprep.subr.mxu0 0.0
  %1088 = vmatpush1.msra.mxu0 0.0
  %1089 = vmatprep.subr.mxu0 0.0
  %1090 = vmatpush1.msra.mxu0 0.0
  %1091 = vmatprep.subr.mxu0 0.0
  %1092 = vmatpush1.msra.mxu0 0.0
  %1093 = vmatprep.subr.mxu0 0.0
  %1094 = vmatpush1.msra.mxu0 0.0
  %1095 = vmatprep.subr.mxu0 0.0
  %1096 = vmatpush1.msra.mxu0 0.0
  %1097 = vmatprep.subr.mxu0 0.0
  %1098 = vmatpush1.msra.mxu0 0.0
  %1099 = vmatprep.subr.mxu0 0.0
  %1100 = vmatpush1.msra.mxu0 0.0
  %1101 = vmatprep.subr.mxu0 0.0
  %1102 = vmatpush1.msra.mxu0 0.0
  %1103 = vmatprep.subr.mxu0 0.0
  %1104 = vmatpush1.msra.mxu0 0.0
  %1105 = vmatprep.subr.mxu0 0.0
  %1106 = vmatpush1.msra.mxu0 0.0
  %1107 = vmatprep.subr.mxu0 0.0
  %1108 = vmatpush1.msra.mxu0 0.0
  %1109 = vmatprep.subr.mxu0 0.0
  %1110 = vmatpush1.msra.mxu0 0.0
  %1111 = vmatprep.subr.mxu0 0.0
  %1112 = vmatpush1.msra.mxu0 0.0
  %1113 = vmatprep.subr.mxu0 0.0
  %1114 = vmatpush1.msra.mxu0 0.0
  %1115 = vmatprep.subr.mxu0 0.0
  %1116 = vmatpush1.msra.mxu0 0.0
  %1117 = vmatprep.subr.mxu0 0.0
  %1118 = vmatpush1.msra.mxu0 0.0
  %1119 = vmatprep.subr.mxu0 0.0
  %1120 = vmatpush1.msra.mxu0 0.0
  %1121 = vmatprep.subr.mxu0 0.0
  %1122 = vmatpush1.msra.mxu0 0.0
  %1123 = vmatprep.mubr.f32.mxu0 0.0
  %1124 = vmatmul.mubr.f32.gmra.mrb[0].mxu0 %v1057
  %v1125 = vpop.f32.mrb[0].mxu0
  %v1126 = vadd.f32 0.0, %v1125
  %v1127 = vpop.f32.mrb[0].mxu0
  %1128 = vdwg.mxu0
  %1130 = vrot.lane.b32.xlu0 %v1126, 64
  %v1131 = vpop.permute.xlu0 %1130
  %v1133 = vadd.f32 %v1054, %v1131
  %1135 = vrot.lane.b32.xlu0 %v1133, 64
  %v1136 = vpop.permute.xlu0 %1135
  %1138 = vst.msk [vmem:[%s9 + $0x8] sm:$0xff] %vm588, %v1136
  // Predicated region
  $region38: #{tpu_custom_call.1} parent=0 // pred_check
    _
  $region39: #{tpu_custom_call.1} parent=0 // pred_check_branch
    %1140 = sbr.rel (0) target = $region41
  $region40: #{tpu_custom_call.1} parent=0 // pred_region
    _
  $region41: #{tpu_custom_call.1} parent=0 // pred_fallthru
    _
  // Predicated region
  $region42: #{tpu_custom_call.1} parent=0 // pred_check
    _
  $region43: #{tpu_custom_call.1} parent=0 // pred_check_branch
    %1142 = sbr.rel (0) target = $region45
  $region44: #{tpu_custom_call.1} parent=0 // pred_region
    _
  $region45: #{tpu_custom_call.1} parent=0 // pred_fallthru
    _

</llo_original>
